<compile_context>
chip_gen: v6e
topology: v6e:2x2x1
jax: 0.10.0
libtpu: 0.0.40
codegen_flags: <defaults>
</compile_context>

<pallas_src>
import functools

import jax
import jax.numpy as jnp
import numpy as np
from jax.experimental import pallas as pl
from jax.experimental.pallas import tpu as pltpu

EPS = 1e-5
LANES = 128
STAT_ROWS = 8   # sum / sumsq rows, padded to 8 sublanes

# Matmul-operand dtype.  The review recommends bfloat16 for production shapes
# (2x HBM BW, 2x MXU throughput on v6e/v7x); kept float32 here so this toy test
# matches the f32 PyTorch semantics to 1e-3.  Flip to jnp.bfloat16 at real sizes.
MATMUL_DTYPE = jnp.float32


# ----------------------------- Pallas kernels ------------------------------ #

def _matmul_stats_kernel(p_ref, w_ref, y_ref, stats_ref):
    """y_tile = p_tile @ w (f32 accumulate) + per-tile per-channel sum / sumsq."""
    y = jnp.dot(p_ref[...], w_ref[...], preferred_element_type=jnp.float32)
    y_ref[...] = y
    cp = y_ref.shape[1]
    s = jnp.sum(y, axis=0, keepdims=True)          # (1, CP)
    ss = jnp.sum(y * y, axis=0, keepdims=True)     # (1, CP)
    pad = jnp.zeros((STAT_ROWS - 2, cp), jnp.float32)
    stats_ref[...] = jnp.concatenate([s, ss, pad], axis=0)[None, :, :]


def _affine_relu_kernel(y_ref, s_ref, b_ref, o_ref):
    """o = relu(y * scale + bias)  -- folded BatchNorm + affine (one FMA/element)."""
    o_ref[...] = jnp.maximum(y_ref[...] * s_ref[...] + b_ref[...], 0.0)


def _affine_add_relu_kernel(y_ref, s_ref, b_ref, r_ref, sr_ref, br_ref, o_ref):
    """o = relu(bn2(conv2) + bn_sc(shortcut)) as two folded FMAs + add + relu."""
    o_ref[...] = jnp.maximum(
        y_ref[...] * s_ref[...] + b_ref[...]
        + r_ref[...] * sr_ref[...] + br_ref[...], 0.0)


# ----------------------------- pallas_call wrappers ------------------------- #

def _compiler_params():
    # Explicit VMEM budget (review: v7x has 64 MiB total / ~32 MiB scoped); the
    # per-step footprint here is only a few MiB even at tile_m = 2048.
    return pltpu.CompilerParams(
        dimension_semantics=("parallel",),
        vmem_limit_bytes=32 * 1024 * 1024,
    )


def _row_spec(tile_m, cols):
    return pl.BlockSpec((tile_m, cols), lambda i: (i, 0))


def _vec_spec(cols):
    return pl.BlockSpec((1, cols), lambda i: (0, 0))


def _conv_matmul_stats(patches, w, tile_m):
    """Tiled matmul over the M axis; emits y (Mp, CP) and per-tile BN partials."""
    Mp, KP = patches.shape
    CP = w.shape[1]
    n_tiles = Mp // tile_m
    y, stats = pl.pallas_call(
        _matmul_stats_kernel,
        out_shape=(jax.ShapeDtypeStruct((Mp, CP), jnp.float32),
                   jax.ShapeDtypeStruct((n_tiles, STAT_ROWS, CP), jnp.float32)),
        grid=(n_tiles,),
        in_specs=[_row_spec(tile_m, KP),
                  pl.BlockSpec((KP, CP), lambda i: (0, 0))],     # weights: full block
        out_specs=[_row_spec(tile_m, CP),
                   pl.BlockSpec((1, STAT_ROWS, CP), lambda i: (i, 0, 0))],
        compiler_params=_compiler_params(),
    )(patches, w)
    return y, stats


def _affine_relu(y, scale, bias, tile_m):
    Mp, CP = y.shape
    n_tiles = Mp // tile_m
    return pl.pallas_call(
        _affine_relu_kernel,
        out_shape=jax.ShapeDtypeStruct((Mp, CP), jnp.float32),
        grid=(n_tiles,),
        in_specs=[_row_spec(tile_m, CP), _vec_spec(CP), _vec_spec(CP)],
        out_specs=_row_spec(tile_m, CP),
        compiler_params=_compiler_params(),
    )(y, scale, bias)


def _affine_add_relu(y, scale, bias, res, scale_r, bias_r, tile_m):
    Mp, CP = y.shape
    n_tiles = Mp // tile_m
    return pl.pallas_call(
        _affine_add_relu_kernel,
        out_shape=jax.ShapeDtypeStruct((Mp, CP), jnp.float32),
        grid=(n_tiles,),
        in_specs=[_row_spec(tile_m, CP), _vec_spec(CP), _vec_spec(CP),
                  _row_spec(tile_m, CP), _vec_spec(CP), _vec_spec(CP)],
        out_specs=_row_spec(tile_m, CP),
        # The residual carrier (y1, input index 3) is dead after this kernel:
        # reuse its HBM buffer for the block output.
        input_output_aliases={3: 0},
        compiler_params=_compiler_params(),
    )(y, scale, bias, res, scale_r, bias_r)


# ------------------------------- JAX glue ---------------------------------- #

def _im2col_3x3(x_nhwc):
    """3x3 / stride-1 / pad-1 im2col -> (N*H*W, 9*C); kh-major, kw, channel-minor."""
    # TODO(synk): replace the materialized im2col with in-kernel 9-tap shifted
    # matmul accumulation to cut conv-input HBM traffic ~9x at real ResNet sizes.
    N, H, W, C = x_nhwc.shape
    xp = jnp.pad(x_nhwc, ((0, 0), (1, 1), (1, 1), (0, 0)))
    cols = [xp[:, kh:kh + H, kw:kw + W, :] for kh in range(3) for kw in range(3)]
    return jnp.concatenate(cols, axis=-1).reshape(N * H * W, 9 * C)


def _round_up(v, m):
    return ((v + m - 1) // m) * m


def _pad_axis(a, axis, target):
    pad = target - a.shape[axis]
    if pad == 0:
        return a
    widths = [(0, 0)] * a.ndim
    widths[axis] = (0, pad)
    return jnp.pad(a, widths)


def _fold_bn(stats, count, gamma, beta, col_off, cp):
    """Finish the cross-tile (sum, sumsq) reduction and fold BN + affine into a
    single per-channel (scale, bias) pair, zero outside [col_off, col_off+Cout)."""
    total = jnp.sum(stats, axis=0)                       # (STAT_ROWS, CP)
    mean = total[0] / count
    var = jnp.maximum(total[1] / count - mean * mean, 0.0)   # biased batch variance
    n = gamma.size
    g = jnp.zeros((cp,), jnp.float32).at[col_off:col_off + n].set(gamma.reshape(-1))
    b = jnp.zeros((cp,), jnp.float32).at[col_off:col_off + n].set(beta.reshape(-1))
    scale = g * jax.lax.rsqrt(var + EPS)
    bias = b - mean * scale
    return scale.reshape(1, cp), bias.reshape(1, cp)


def basic_block_forward(x_nchw, params, *, tile_m=512):
    """Pallas BasicBlock.forward (stride=1, in_planes != planes => 1x1 conv + BN shortcut)."""
    x = jnp.transpose(x_nchw, (0, 2, 3, 1)).astype(jnp.float32)       # NHWC
    N, H, W, Cin = x.shape
    Cout = params["w1"].shape[-1]

    M = N * H * W
    CP = _round_up(2 * Cout, LANES)       # lane-dense padded channel axis
    SC_OFF = CP // 2                      # columns of shortcut / conv2 outputs
    tile_m = _round_up(max(8, min(tile_m, M)), 8)
    Mp = _round_up(M, tile_m)             # padded rows are zeros -> BN sums unaffected
    count = jnp.float32(M)                # BN statistics use the *real* row count

    # ---- layer 1: fused conv1(3x3) + shortcut(1x1) matmul + partial BN stats ----
    p1 = _im2col_3x3(x)                                   # (M, 9*Cin)
    K1 = _round_up(9 * Cin, LANES)
    p1 = _pad_axis(_pad_axis(p1, 1, K1), 0, Mp).astype(MATMUL_DTYPE)

    w1_mat = params["w1"].reshape(9 * Cin, Cout)
    wf = jnp.zeros((K1, CP), jnp.float32)
    wf = wf.at[:9 * Cin, :Cout].set(w1_mat)                               # conv1 -> cols [0, Cout)
    wf = wf.at[4 * Cin:5 * Cin, SC_OFF:SC_OFF + Cout].set(params["wsc"])  # 1x1 shortcut: centre tap
    wf = wf.astype(MATMUL_DTYPE)

    y1, stats1 = _conv_matmul_stats(p1, wf, tile_m)       # (Mp, CP), (T, 8, CP)

    scale1, bias1 = _fold_bn(stats1, count, params["g1"], params["b1"], 0, CP)
    scale_sc, bias_sc = _fold_bn(stats1, count, params["gsc"], params["bsc"], SC_OFF, CP)

    # relu(bn1(conv1)) in cols [0, Cout); exactly zero elsewhere (scale=bias=0).
    out1 = _affine_relu(y1, scale1, bias1, tile_m)

    # ---- layer 2: conv2(3x3) matmul + stats, then bn2 + shortcut-bn + add + relu ----
    out1_img = out1[:M, :Cout].reshape(N, H, W, Cout)
    p2 = _im2col_3x3(out1_img)                            # (M, 9*Cout)
    K2 = _round_up(9 * Cout, LANES)
    p2 = _pad_axis(_pad_axis(p2, 1, K2), 0, Mp).astype(MATMUL_DTYPE)

    w2_mat = params["w2"].reshape(9 * Cout, Cout)
    w2p = jnp.zeros((K2, CP), jnp.float32)
    # conv2 output shares the shortcut's column range so the residual add below is a
    # plain column-aligned FMA directly on y1 (which still holds the pre-BN shortcut).
    w2p = w2p.at[:9 * Cout, SC_OFF:SC_OFF + Cout].set(w2_mat).astype(MATMUL_DTYPE)

    y2, stats2 = _conv_matmul_stats(p2, w2p, tile_m)

    scale2, bias2 = _fold_bn(stats2, count, params["g2"], params["b2"], SC_OFF, CP)

    out = _affine_add_relu(y2, scale2, bias2, y1, scale_sc, bias_sc, tile_m)

    out = out[:M, SC_OFF:SC_OFF + Cout].reshape(N, H, W, Cout)
    return jnp.transpose(out, (0, 3, 1, 2))               # back to NCHW


# --------------------------- pure-JAX reference ----------------------------- #

def _reference(x_nchw, params):
    x = jnp.transpose(x_nchw, (0, 2, 3, 1)).astype(jnp.float32)

    def conv3(inp, w):
        return jax.lax.conv_general_dilated(
            inp, w, window_strides=(1, 1), padding="SAME",
            dimension_numbers=("NHWC", "HWIO", "NHWC"))

    def bn(y, g, b):
        mean = jnp.mean(y, axis=(0, 1, 2), keepdims=True)
        var = jnp.mean(jnp.square(y - mean), axis=(0, 1, 2), keepdims=True)
        return (y - mean) * jax.lax.rsqrt(var + EPS) * g.reshape(1, 1, 1, -1) \
            + b.reshape(1, 1, 1, -1)

    out = jax.nn.relu(bn(conv3(x, params["w1"]), params["g1"], params["b1"]))
    out = bn(conv3(out, params["w2"]), params["g2"], params["b2"])
    sc = bn(jnp.einsum("nhwc,cd->nhwd", x, params["wsc"]),
            params["gsc"], params["bsc"])
    out = jax.nn.relu(out + sc)
    return jnp.transpose(out, (0, 3, 1, 2))


# ---------------------------------- main ------------------------------------ #

if __name__ == "__main__":
    key = jax.random.PRNGKey(0)
    ks = jax.random.split(key, 10)

    N, Cin, H, W = 2, 4, 16, 16
    Cout = 8    # planes; in_planes != planes => shortcut = 1x1 conv + BN

    x = jax.random.normal(ks[0], (N, Cin, H, W), dtype=jnp.float32)

    params = {
        # conv weights stored HWIO; PyTorch's (Cout, Cin, kh, kw) maps via transpose(2,3,1,0)
        "w1": 0.1 * jax.random.normal(ks[1], (3, 3, Cin, Cout), dtype=jnp.float32),
        "w2": 0.1 * jax.random.normal(ks[2], (3, 3, Cout, Cout), dtype=jnp.float32),
        "wsc": 0.1 * jax.random.normal(ks[3], (Cin, Cout), dtype=jnp.float32),
        # BN affine params (random instead of PyTorch's ones/zeros init so the
        # folded scale/bias path of the kernels is actually exercised)
        "g1": 1.0 + 0.1 * jax.random.normal(ks[4], (Cout,), dtype=jnp.float32),
        "b1": 0.1 * jax.random.normal(ks[5], (Cout,), dtype=jnp.float32),
        "g2": 1.0 + 0.1 * jax.random.normal(ks[6], (Cout,), dtype=jnp.float32),
        "b2": 0.1 * jax.random.normal(ks[7], (Cout,), dtype=jnp.float32),
        "gsc": 1.0 + 0.1 * jax.random.normal(ks[8], (Cout,), dtype=jnp.float32),
        "bsc": 0.1 * jax.random.normal(ks[9], (Cout,), dtype=jnp.float32),
    }

    # tile_m=128 => 4 M-tiles at this toy size: exercises the pipelined grid and the
    # cross-tile BN-statistics reduction (sweep 512..2048 at real ResNet sizes,
    # roughly halved on v7x for its 64 MiB VMEM).
    fwd = jax.jit(functools.partial(basic_block_forward, tile_m=128))
    out = jax.block_until_ready(fwd(x, params))

    ref = jax.block_until_ready(_reference(x, params))
    if not np.allclose(np.asarray(out), np.asarray(ref), rtol=1e-3, atol=1e-3):
        err = float(np.max(np.abs(np.asarray(out) - np.asarray(ref))))
        raise AssertionError(f"Pallas BasicBlock does not match reference (max err {err})")

    # TODO(synk): BatchNorm running-statistics updates (training-time side effect,
    # no effect on the forward output) and the in-kernel 9-tap conv (to avoid the
    # materialized im2col) are not implemented.
    print("KERNEL_OK")
</pallas_src>

<mosaic_0001>
module attributes {stable_mosaic.version = 11 : i64} {
  func.func @_matmul_stats_kernel(%arg0: i32, %arg1: memref<128x128xf32, #tpu.memory_space<vmem>>, %arg2: memref<128x128xf32, #tpu.memory_space<vmem>>, %arg3: memref<128x128xf32, #tpu.memory_space<vmem>>, %arg4: memref<1x8x128xf32, #tpu.memory_space<vmem>>) attributes {dimension_semantics = [#tpu.dimension_semantics<parallel>], iteration_bounds = array<i64: 4>, scalar_prefetch = 0 : i64, scratch_operands = 0 : i64, tpu.core_type = #tpu.core_type<tc>, window_params = [{transform_indices = @transform_0, window_bounds = array<i64: 128, 128>}, {pipeline_mode = #tpu.pipeline_mode<synchronous>, transform_indices = @transform_1, window_bounds = array<i64: 128, 128>}, {transform_indices = @transform_2, window_bounds = array<i64: 128, 128>}, {transform_indices = @transform_3, window_bounds = array<i64: 1, 8, 128>}]} {
    %c0 = arith.constant 0 : index
    %c0_0 = arith.constant 0 : index
    %0 = vector.load %arg1[%c0, %c0_0] : memref<128x128xf32, #tpu.memory_space<vmem>>, vector<128x128xf32>
    %c0_1 = arith.constant 0 : index
    %c0_2 = arith.constant 0 : index
    %1 = vector.load %arg2[%c0_1, %c0_2] : memref<128x128xf32, #tpu.memory_space<vmem>>, vector<128x128xf32>
    %cst = arith.constant dense<0.000000e+00> : vector<128x128xf32>
    %2 = tpu.matmul %0, %1, %cst {dimension_numbers = #tpu.dot_dimension_numbers<[1], [0], [0], [1], [0, 0, 1, 1], [], []>} : vector<128x128xf32>, vector<128x128xf32>, vector<128x128xf32> -> vector<128x128xf32>
    %c0_3 = arith.constant 0 : index
    %c0_4 = arith.constant 0 : index
    %3 = vector.load %arg3[%c0_3, %c0_4] : memref<128x128xf32, #tpu.memory_space<vmem>>, vector<128x128xf32>
    tpu.vector_store %arg3[%c0_3, %c0_4], %2 {strides = array<i32>} : memref<128x128xf32, #tpu.memory_space<vmem>>, vector<128x128xf32>,
    %cst_5 = arith.constant dense<0.000000e+00> : vector<128xf32>
    %4 = vector.multi_reduction <add>, %2, %cst_5 [0] : vector<128x128xf32> to vector<128xf32>
    %5 = vector.shape_cast %4 : vector<128xf32> to vector<1x128xf32>
    %6 = arith.mulf %2, %2 : vector<128x128xf32>
    %cst_6 = arith.constant dense<0.000000e+00> : vector<128xf32>
    %7 = vector.multi_reduction <add>, %6, %cst_6 [0] : vector<128x128xf32> to vector<128xf32>
    %8 = vector.shape_cast %7 : vector<128xf32> to vector<1x128xf32>
    %cst_7 = arith.constant 0.000000e+00 : f32
    %9 = vector.broadcast %cst_7 : f32 to vector<6x128xf32>
    %10 = tpu.concatenate %5, %8, %9 in 0 : vector<1x128xf32>, vector<1x128xf32>, vector<6x128xf32> -> vector<8x128xf32>
    %11 = vector.shape_cast %10 : vector<8x128xf32> to vector<1x8x128xf32>
    %c0_8 = arith.constant 0 : index
    %c0_9 = arith.constant 0 : index
    %c0_10 = arith.constant 0 : index
    %12 = vector.load %arg4[%c0_8, %c0_9, %c0_10] : memref<1x8x128xf32, #tpu.memory_space<vmem>>, vector<1x8x128xf32>
    tpu.vector_store %arg4[%c0_8, %c0_9, %c0_10], %11 {strides = array<i32>} : memref<1x8x128xf32, #tpu.memory_space<vmem>>, vector<1x8x128xf32>,
    return
  }
  func.func @transform_0(%arg0: i32) -> (i32, i32) {
    %c0_i32 = arith.constant 0 : i32
    %c0_i32_0 = arith.constant 0 : i32
    return %arg0, %c0_i32 : i32, i32
  }
  func.func @transform_1(%arg0: i32) -> (i32, i32) {
    %c0_i32 = arith.constant 0 : i32
    %c0_i32_0 = arith.constant 0 : i32
    %c0_i32_1 = arith.constant 0 : i32
    return %c0_i32, %c0_i32_0 : i32, i32
  }
  func.func @transform_2(%arg0: i32) -> (i32, i32) {
    %c0_i32 = arith.constant 0 : i32
    %c0_i32_0 = arith.constant 0 : i32
    return %arg0, %c0_i32 : i32, i32
  }
  func.func @transform_3(%arg0: i32) -> (i32, i32, i32) {
    %c0_i32 = arith.constant 0 : i32
    %c0_i32_0 = arith.constant 0 : i32
    %c0_i32_1 = arith.constant 0 : i32
    return %arg0, %c0_i32, %c0_i32_0 : i32, i32, i32
  }
}

module attributes {stable_mosaic.version = 11 : i64} {
  func.func @_affine_relu_kernel(%arg0: i32, %arg1: memref<128x128xf32, #tpu.memory_space<vmem>>, %arg2: memref<1x128xf32, #tpu.memory_space<vmem>>, %arg3: memref<1x128xf32, #tpu.memory_space<vmem>>, %arg4: memref<128x128xf32, #tpu.memory_space<vmem>>) attributes {dimension_semantics = [#tpu.dimension_semantics<parallel>], iteration_bounds = array<i64: 4>, scalar_prefetch = 0 : i64, scratch_operands = 0 : i64, tpu.core_type = #tpu.core_type<tc>, window_params = [{transform_indices = @transform_0, window_bounds = array<i64: 128, 128>}, {pipeline_mode = #tpu.pipeline_mode<synchronous>, transform_indices = @transform_1, window_bounds = array<i64: 1, 128>}, {pipeline_mode = #tpu.pipeline_mode<synchronous>, transform_indices = @transform_2, window_bounds = array<i64: 1, 128>}, {transform_indices = @transform_3, window_bounds = array<i64: 128, 128>}]} {
    %c0 = arith.constant 0 : index
    %c0_0 = arith.constant 0 : index
    %0 = vector.load %arg1[%c0, %c0_0] : memref<128x128xf32, #tpu.memory_space<vmem>>, vector<128x128xf32>
    %c0_1 = arith.constant 0 : index
    %c0_2 = arith.constant 0 : index
    %1 = vector.load %arg2[%c0_1, %c0_2] : memref<1x128xf32, #tpu.memory_space<vmem>>, vector<1x128xf32>
    %2 = vector.broadcast %1 : vector<1x128xf32> to vector<128x128xf32>
    %3 = arith.mulf %0, %2 : vector<128x128xf32>
    %c0_3 = arith.constant 0 : index
    %c0_4 = arith.constant 0 : index
    %4 = vector.load %arg3[%c0_3, %c0_4] : memref<1x128xf32, #tpu.memory_space<vmem>>, vector<1x128xf32>
    %5 = vector.broadcast %4 : vector<1x128xf32> to vector<128x128xf32>
    %6 = arith.addf %3, %5 : vector<128x128xf32>
    %cst = arith.constant 0.000000e+00 : f32
    %7 = vector.broadcast %cst : f32 to vector<128x128xf32>
    %8 = arith.maximumf %6, %7 : vector<128x128xf32>
    %c0_5 = arith.constant 0 : index
    %c0_6 = arith.constant 0 : index
    %9 = vector.load %arg4[%c0_5, %c0_6] : memref<128x128xf32, #tpu.memory_space<vmem>>, vector<128x128xf32>
    tpu.vector_store %arg4[%c0_5, %c0_6], %8 {strides = array<i32>} : memref<128x128xf32, #tpu.memory_space<vmem>>, vector<128x128xf32>,
    return
  }
  func.func @transform_0(%arg0: i32) -> (i32, i32) {
    %c0_i32 = arith.constant 0 : i32
    %c0_i32_0 = arith.constant 0 : i32
    return %arg0, %c0_i32 : i32, i32
  }
  func.func @transform_1(%arg0: i32) -> (i32, i32) {
    %c0_i32 = arith.constant 0 : i32
    %c0_i32_0 = arith.constant 0 : i32
    %c0_i32_1 = arith.constant 0 : i32
    return %c0_i32, %c0_i32_0 : i32, i32
  }
  func.func @transform_2(%arg0: i32) -> (i32, i32) {
    %c0_i32 = arith.constant 0 : i32
    %c0_i32_0 = arith.constant 0 : i32
    %c0_i32_1 = arith.constant 0 : i32
    return %c0_i32, %c0_i32_0 : i32, i32
  }
  func.func @transform_3(%arg0: i32) -> (i32, i32) {
    %c0_i32 = arith.constant 0 : i32
    %c0_i32_0 = arith.constant 0 : i32
    return %arg0, %c0_i32 : i32, i32
  }
}

module attributes {stable_mosaic.version = 11 : i64} {
  func.func @_affine_add_relu_kernel(%arg0: i32, %arg1: memref<128x128xf32, #tpu.memory_space<vmem>>, %arg2: memref<1x128xf32, #tpu.memory_space<vmem>>, %arg3: memref<1x128xf32, #tpu.memory_space<vmem>>, %arg4: memref<128x128xf32, #tpu.memory_space<vmem>>, %arg5: memref<1x128xf32, #tpu.memory_space<vmem>>, %arg6: memref<1x128xf32, #tpu.memory_space<vmem>>, %arg7: memref<128x128xf32, #tpu.memory_space<vmem>>) attributes {dimension_semantics = [#tpu.dimension_semantics<parallel>], iteration_bounds = array<i64: 4>, scalar_prefetch = 0 : i64, scratch_operands = 0 : i64, tpu.core_type = #tpu.core_type<tc>, window_params = [{transform_indices = @transform_0, window_bounds = array<i64: 128, 128>}, {pipeline_mode = #tpu.pipeline_mode<synchronous>, transform_indices = @transform_1, window_bounds = array<i64: 1, 128>}, {pipeline_mode = #tpu.pipeline_mode<synchronous>, transform_indices = @transform_2, window_bounds = array<i64: 1, 128>}, {transform_indices = @transform_3, window_bounds = array<i64: 128, 128>}, {pipeline_mode = #tpu.pipeline_mode<synchronous>, transform_indices = @transform_4, window_bounds = array<i64: 1, 128>}, {pipeline_mode = #tpu.pipeline_mode<synchronous>, transform_indices = @transform_5, window_bounds = array<i64: 1, 128>}, {transform_indices = @transform_6, window_bounds = array<i64: 128, 128>}]} {
    %c0 = arith.constant 0 : index
    %c0_0 = arith.constant 0 : index
    %0 = vector.load %arg1[%c0, %c0_0] : memref<128x128xf32, #tpu.memory_space<vmem>>, vector<128x128xf32>
    %c0_1 = arith.constant 0 : index
    %c0_2 = arith.constant 0 : index
    %1 = vector.load %arg2[%c0_1, %c0_2] : memref<1x128xf32, #tpu.memory_space<vmem>>, vector<1x128xf32>
    %2 = vector.broadcast %1 : vector<1x128xf32> to vector<128x128xf32>
    %3 = arith.mulf %0, %2 : vector<128x128xf32>
    %c0_3 = arith.constant 0 : index
    %c0_4 = arith.constant 0 : index
    %4 = vector.load %arg3[%c0_3, %c0_4] : memref<1x128xf32, #tpu.memory_space<vmem>>, vector<1x128xf32>
    %5 = vector.broadcast %4 : vector<1x128xf32> to vector<128x128xf32>
    %6 = arith.addf %3, %5 : vector<128x128xf32>
    %c0_5 = arith.constant 0 : index
    %c0_6 = arith.constant 0 : index
    %7 = vector.load %arg4[%c0_5, %c0_6] : memref<128x128xf32, #tpu.memory_space<vmem>>, vector<128x128xf32>
    %c0_7 = arith.constant 0 : index
    %c0_8 = arith.constant 0 : index
    %8 = vector.load %arg5[%c0_7, %c0_8] : memref<1x128xf32, #tpu.memory_space<vmem>>, vector<1x128xf32>
    %9 = vector.broadcast %8 : vector<1x128xf32> to vector<128x128xf32>
    %10 = arith.mulf %7, %9 : vector<128x128xf32>
    %11 = arith.addf %6, %10 : vector<128x128xf32>
    %c0_9 = arith.constant 0 : index
    %c0_10 = arith.constant 0 : index
    %12 = vector.load %arg6[%c0_9, %c0_10] : memref<1x128xf32, #tpu.memory_space<vmem>>, vector<1x128xf32>
    %13 = vector.broadcast %12 : vector<1x128xf32> to vector<128x128xf32>
    %14 = arith.addf %11, %13 : vector<128x128xf32>
    %cst = arith.constant 0.000000e+00 : f32
    %15 = vector.broadcast %cst : f32 to vector<128x128xf32>
    %16 = arith.maximumf %14, %15 : vector<128x128xf32>
    %c0_11 = arith.constant 0 : index
    %c0_12 = arith.constant 0 : index
    %17 = vector.load %arg7[%c0_11, %c0_12] : memref<128x128xf32, #tpu.memory_space<vmem>>, vector<128x128xf32>
    tpu.vector_store %arg7[%c0_11, %c0_12], %16 {strides = array<i32>} : memref<128x128xf32, #tpu.memory_space<vmem>>, vector<128x128xf32>,
    return
  }
  func.func @transform_0(%arg0: i32) -> (i32, i32) {
    %c0_i32 = arith.constant 0 : i32
    %c0_i32_0 = arith.constant 0 : i32
    return %arg0, %c0_i32 : i32, i32
  }
  func.func @transform_1(%arg0: i32) -> (i32, i32) {
    %c0_i32 = arith.constant 0 : i32
    %c0_i32_0 = arith.constant 0 : i32
    %c0_i32_1 = arith.constant 0 : i32
    return %c0_i32, %c0_i32_0 : i32, i32
  }
  func.func @transform_2(%arg0: i32) -> (i32, i32) {
    %c0_i32 = arith.constant 0 : i32
    %c0_i32_0 = arith.constant 0 : i32
    %c0_i32_1 = arith.constant 0 : i32
    return %c0_i32, %c0_i32_0 : i32, i32
  }
  func.func @transform_3(%arg0: i32) -> (i32, i32) {
    %c0_i32 = arith.constant 0 : i32
    %c0_i32_0 = arith.constant 0 : i32
    return %arg0, %c0_i32 : i32, i32
  }
  func.func @transform_4(%arg0: i32) -> (i32, i32) {
    %c0_i32 = arith.constant 0 : i32
    %c0_i32_0 = arith.constant 0 : i32
    %c0_i32_1 = arith.constant 0 : i32
    return %c0_i32, %c0_i32_0 : i32, i32
  }
  func.func @transform_5(%arg0: i32) -> (i32, i32) {
    %c0_i32 = arith.constant 0 : i32
    %c0_i32_0 = arith.constant 0 : i32
    %c0_i32_1 = arith.constant 0 : i32
    return %c0_i32, %c0_i32_0 : i32, i32
  }
  func.func @transform_6(%arg0: i32) -> (i32, i32) {
    %c0_i32 = arith.constant 0 : i32
    %c0_i32_0 = arith.constant 0 : i32
    return %arg0, %c0_i32 : i32, i32
  }
}

</mosaic_0001>

<llo_original>
// kernel: basic_block_forward.4
$region0: #{basic_block_forward.4}
  #allocation0 [shape = 'u32[]', space=smem, size = 0x4, offset = 0x4, fixed_abs, tag = 'smem constant byte address 0x4 - core index']
  #allocation1 [shape = 'u32[144,128]{1,0:T(1,128)}', space=vmem, size = 0x12000, scoped, tag = 'internal scratch']
  %s0 = inlined_call_operand.vmem [shape: f32[512,128], index: 0, kind: input, shape index: {}]
  %s1 = inlined_call_operand.vmem [shape: f32[128,128], index: 1, kind: input, shape index: {}]
  %s2 = inlined_call_operand.vmem [shape: f32[512,128], index: 2, kind: output, shape index: {0}]
  %s3 = inlined_call_operand.vmem [shape: f32[4,8,128], index: 3, kind: output, shape index: {1}]
  %4 = xla_tuple %s2, %s3
  %s5 = sld [smem:[#allocation0]]
  $region49: #{basic_block_forward.4} parent=0
    _
  %s7 = ssub.s32 1, %s5
  %s8 = scalar_select 0, %s7, %s5
  loop: start=0, step=1, limit=6
  $region2: #{basic_block_forward.4} parent=0 // loop_pre_header
    _
  $region3: #{basic_block_forward.4} parent=0 // loop_header
    %s10 = sphi 0, %s14
    %p11 = scmp.ge.s32.totalorder %s10, 6
    %s20 = sphi 0, %s22
    %s23 = sphi 0, %s20
    %s24 = sphi 0, %s23
    %s40 = sphi 0, %s24
    %s44 = sphi 0, %s44
    %s46 = sphi 0, %s44
    %s47 = sphi 0, %s46
    %s61 = sphi 0, %s47
    %s67 = sphi 0, %s69
    %s70 = sphi 0, %s67
    %s71 = sphi 0, %s70
    %s87 = sphi 0, %s71
    %s93 = sphi 0, %s95
    %s96 = sphi 0, %s93
    %s97 = sphi 0, %s96
    %s113 = sphi 0, %s97
  $region4: #{basic_block_forward.4} parent=0 // loop_header_branch
    %13 = sbr.rel (%p11) target = $region8
  $region5: #{basic_block_forward.4} parent=0 // loop_body
    %s15 = ssub.s32 %s10, 1
    %s16 = ssub.s32 %s10, 2
    %s17 = sadd.s32 %s10, 1
    %s18 = ssub.s32 %s10, %s17
    %p19 = scmp.eq.s32.totalorder %s18, 0
    %s21 = sadd.s32 %s20, 1
    %s22 = scalar_select %p19, %s20, %s21
    %p25 = pneg %p19
    %p26 = scmp.eq.s32.totalorder %s10, 3
    %p27 = por %p25, %p26
    %p28 = scmp.ne.s32.totalorder %s20, %s23
    %p29 = scmp.eq.s32.totalorder %s10, 0
    %p30 = por %p28, %p29
    %p31 = scmp.ne.s32.totalorder %s20, %s23
    %p32 = scmp.eq.s32.totalorder %s15, 3
    %p33 = por %p31, %p32
    %p34 = scmp.ne.s32.totalorder %s23, %s24
    %p35 = scmp.eq.s32.totalorder %s15, 0
    %p36 = por %p34, %p35
    %p37 = scmp.ne.s32.totalorder %s23, %s24
    %p38 = scmp.eq.s32.totalorder %s16, 3
    %p39 = por %p37, %p38
    %p41 = scmp.ne.s32.totalorder %s24, %s40
    %p42 = scmp.eq.s32.totalorder %s16, 0
    %p43 = por %p41, %p42
    %s45 = sadd.s32 %s44, 1
    %p48 = scmp.eq.s32.totalorder %s10, 3
    %p49 = scmp.ne.s32.totalorder %s44, %s46
    %p50 = scmp.eq.s32.totalorder %s10, 0
    %p51 = por %p49, %p50
    %p52 = scmp.ne.s32.totalorder %s44, %s46
    %p53 = scmp.eq.s32.totalorder %s15, 3
    %p54 = por %p52, %p53
    %p55 = scmp.ne.s32.totalorder %s46, %s47
    %p56 = scmp.eq.s32.totalorder %s15, 0
    %p57 = por %p55, %p56
    %p58 = scmp.ne.s32.totalorder %s46, %s47
    %p59 = scmp.eq.s32.totalorder %s16, 3
    %p60 = por %p58, %p59
    %p62 = scmp.ne.s32.totalorder %s47, %s61
    %p63 = scmp.eq.s32.totalorder %s16, 0
    %p64 = por %p62, %p63
    %s65 = ssub.s32 %s10, %s17
    %p66 = scmp.eq.s32.totalorder %s65, 0
    %s68 = sadd.s32 %s67, 1
    %s69 = scalar_select %p66, %s67, %s68
    %p72 = pneg %p66
    %p73 = scmp.eq.s32.totalorder %s10, 3
    %p74 = por %p72, %p73
    %p75 = scmp.ne.s32.totalorder %s67, %s70
    %p76 = scmp.eq.s32.totalorder %s10, 0
    %p77 = por %p75, %p76
    %p78 = scmp.ne.s32.totalorder %s67, %s70
    %p79 = scmp.eq.s32.totalorder %s15, 3
    %p80 = por %p78, %p79
    %p81 = scmp.ne.s32.totalorder %s70, %s71
    %p82 = scmp.eq.s32.totalorder %s15, 0
    %p83 = por %p81, %p82
    %p84 = scmp.ne.s32.totalorder %s70, %s71
    %p85 = scmp.eq.s32.totalorder %s16, 3
    %p86 = por %p84, %p85
    %p88 = scmp.ne.s32.totalorder %s71, %s87
    %p89 = scmp.eq.s32.totalorder %s16, 0
    %p90 = por %p88, %p89
    %s91 = ssub.s32 %s10, %s17
    %p92 = scmp.eq.s32.totalorder %s91, 0
    %s94 = sadd.s32 %s93, 1
    %s95 = scalar_select %p92, %s93, %s94
    %p98 = pneg %p92
    %p99 = scmp.eq.s32.totalorder %s10, 3
    %p100 = por %p98, %p99
    %p101 = scmp.ne.s32.totalorder %s93, %s96
    %p102 = scmp.eq.s32.totalorder %s10, 0
    %p103 = por %p101, %p102
    %p104 = scmp.ne.s32.totalorder %s93, %s96
    %p105 = scmp.eq.s32.totalorder %s15, 3
    %p106 = por %p104, %p105
    %p107 = scmp.ne.s32.totalorder %s96, %s97
    %p108 = scmp.eq.s32.totalorder %s15, 0
    %p109 = por %p107, %p108
    %p110 = scmp.ne.s32.totalorder %s96, %s97
    %p111 = scmp.eq.s32.totalorder %s16, 3
    %p112 = por %p110, %p111
    %p114 = scmp.ne.s32.totalorder %s97, %s113
    %p115 = scmp.eq.s32.totalorder %s16, 0
    %p116 = por %p114, %p115
    %p117 = scmp.le.s32.totalorder 1, %s10
    %p118 = scmp.lt.s32.totalorder %s10, 5
    %p119 = pnand %p117, %p118
    %p120 = pneg %p119
    // Predicated region
    $region9: #{basic_block_forward.4} parent=5 // pred_check
      _
    $region10: #{basic_block_forward.4} parent=5 // pred_check_branch
      %122 = sbr.rel (%p119) target = $region12
    $region11: #{basic_block_forward.4} parent=5 // pred_region
      %s123 = ssub.s32 %s10, 1
      // Predicated region
      $region13: #{basic_block_forward.4} parent=11 // pred_check
        %p124 = pneg %p57
      $region14: #{basic_block_forward.4} parent=11 // pred_check_branch
        %126 = sbr.rel (%p124) target = $region16
      $region15: #{basic_block_forward.4} parent=11 // pred_region
        _
      $region16: #{basic_block_forward.4} parent=11 // pred_fallthru
        _
    $region12: #{basic_block_forward.4} parent=5 // pred_fallthru
      _
    %p127 = scmp.lt.s32.totalorder %s10, 4
    // Predicated region
    $region17: #{basic_block_forward.4} parent=5 // pred_check
      %p128 = pneg %p127
    $region18: #{basic_block_forward.4} parent=5 // pred_check_branch
      %130 = sbr.rel (%p128) target = $region20
    $region19: #{basic_block_forward.4} parent=5 // pred_region
      // Predicated region
      $region21: #{basic_block_forward.4} parent=19 // pred_check
        %p131 = pneg %p30
      $region22: #{basic_block_forward.4} parent=19 // pred_check_branch
        %133 = sbr.rel (%p131) target = $region24
      $region23: #{basic_block_forward.4} parent=19 // pred_region
        %s134 = smul.u32 16, %s10
        %p135 = scmp.lt.s32.totalorder %s134, 63
        %s136 = scalar_select %p135, %s134, 63
        %s137 = smul.addr %s136, 8
        %s138 = scalar_lea.vmem %s0, %s137
        %s139 = smul.u32 16, %s10
      $region24: #{basic_block_forward.4} parent=19 // pred_fallthru
        _
    $region20: #{basic_block_forward.4} parent=5 // pred_fallthru
      _
    %p140 = scmp.le.s32.totalorder 1, %s10
    %p141 = scmp.lt.s32.totalorder %s10, 5
    %p142 = pnand %p140, %p141
    %p143 = pneg %p142
    // Predicated region
    $region25: #{basic_block_forward.4} parent=5 // pred_check
      _
    $region26: #{basic_block_forward.4} parent=5 // pred_check_branch
      %145 = sbr.rel (%p142) target = $region28
    $region27: #{basic_block_forward.4} parent=5 // pred_region
      %s146 = ssub.s32 %s10, 1
      %s147 = smul.u32 16, %s15
      %p148 = scmp.lt.s32.totalorder %s147, 63
      %s149 = scalar_select %p148, %s147, 63
      %s150 = smul.addr %s149, 8
      %s151 = scalar_lea.vmem %s0, %s150
      %p152 = pneg %p36
      %p153 = pneg %p33
      %p154 = pneg %p57
      %p155 = pneg %p54
      %p156 = pneg %p83
      %p157 = pneg %p80
      %s158 = smul.u32 16, %s15
      %p159 = scmp.lt.s32.totalorder %s158, 63
      %s160 = scalar_select %p159, %s158, 63
      %s161 = smul.addr %s160, 8
      %s162 = scalar_lea.vmem %s2, %s161
      %p163 = pneg %p109
      %p164 = pneg %p106
      %p165 = scmp.lt.s32.totalorder %s15, 3
      %s166 = scalar_select %p165, %s15, 3
      %s167 = smul.addr %s166, 8
      %s168 = scalar_lea.vmem %s3, %s167
      %s169 = smul.u32 16, %s15
      %p170 = scmp.lt.s32.totalorder %s169, 63
      %s171 = scalar_select %p170, %s169, 63
      %s172 = smul.addr %s171, 8
      %s173 = scalar_lea.vmem %s0, %s172
      %s174 = smul.u32 16, %s15
      %s175 = smul.u32 16, %s15
      %p176 = scmp.lt.s32.totalorder %s175, 63
      %s177 = scalar_select %p176, %s175, 63
      %s178 = smul.addr %s177, 8
      %s179 = scalar_lea.vmem %s2, %s178
      %s180 = smul.u32 16, %s15
      %p181 = scmp.lt.s32.totalorder %s15, 3
      %s182 = scalar_select %p181, %s15, 3
      %s183 = smul.addr %s182, 8
      %s184 = scalar_lea.vmem %s3, %s183
      %v185 = vld [vmem:[%s173] sm:$0xff]
      %v186 = vld [vmem:[%s173 + $0x8] sm:$0xff]
      %v187 = vld [vmem:[%s173 + $0x10] sm:$0xff]
      %v188 = vld [vmem:[%s173 + $0x18] sm:$0xff]
      %v189 = vld [vmem:[%s173 + $0x20] sm:$0xff]
      %v190 = vld [vmem:[%s173 + $0x28] sm:$0xff]
      %v191 = vld [vmem:[%s173 + $0x30] sm:$0xff]
      %v192 = vld [vmem:[%s173 + $0x38] sm:$0xff]
      %v193 = vld [vmem:[%s173 + $0x40] sm:$0xff]
      %v194 = vld [vmem:[%s173 + $0x48] sm:$0xff]
      %v195 = vld [vmem:[%s173 + $0x50] sm:$0xff]
      %v196 = vld [vmem:[%s173 + $0x58] sm:$0xff]
      %v197 = vld [vmem:[%s173 + $0x60] sm:$0xff]
      %v198 = vld [vmem:[%s173 + $0x68] sm:$0xff]
      %v199 = vld [vmem:[%s173 + $0x70] sm:$0xff]
      %v200 = vld [vmem:[%s173 + $0x78] sm:$0xff]
      %v201 = vld [vmem:[%s1] sm:$0xff]
      %v202 = vld [vmem:[%s1 + $0x8] sm:$0xff]
      %v203 = vld [vmem:[%s1 + $0x10] sm:$0xff]
      %v204 = vld [vmem:[%s1 + $0x18] sm:$0xff]
      %v205 = vld [vmem:[%s1 + $0x20] sm:$0xff]
      %v206 = vld [vmem:[%s1 + $0x28] sm:$0xff]
      %v207 = vld [vmem:[%s1 + $0x30] sm:$0xff]
      %v208 = vld [vmem:[%s1 + $0x38] sm:$0xff]
      %v209 = vld [vmem:[%s1 + $0x40] sm:$0xff]
      %v210 = vld [vmem:[%s1 + $0x48] sm:$0xff]
      %v211 = vld [vmem:[%s1 + $0x50] sm:$0xff]
      %v212 = vld [vmem:[%s1 + $0x58] sm:$0xff]
      %v213 = vld [vmem:[%s1 + $0x60] sm:$0xff]
      %v214 = vld [vmem:[%s1 + $0x68] sm:$0xff]
      %v215 = vld [vmem:[%s1 + $0x70] sm:$0xff]
      %v216 = vld [vmem:[%s1 + $0x78] sm:$0xff]
      %217 = vmatprep.subr.mxu0 0.0
      %218 = vmatpush1.msra.mxu0 %v216
      %219 = vmatprep.subr.mxu0 0.0
      %220 = vmatpush1.msra.mxu0 %v215
      %221 = vmatprep.subr.mxu0 0.0
      %222 = vmatpush1.msra.mxu0 %v214
      %223 = vmatprep.subr.mxu0 0.0
      %224 = vmatpush1.msra.mxu0 %v213
      %225 = vmatprep.subr.mxu0 0.0
      %226 = vmatpush1.msra.mxu0 %v212
      %227 = vmatprep.subr.mxu0 0.0
      %228 = vmatpush1.msra.mxu0 %v211
      %229 = vmatprep.subr.mxu0 0.0
      %230 = vmatpush1.msra.mxu0 %v210
      %231 = vmatprep.subr.mxu0 0.0
      %232 = vmatpush1.msra.mxu0 %v209
      %233 = vmatprep.subr.mxu0 0.0
      %234 = vmatpush1.msra.mxu0 %v208
      %235 = vmatprep.subr.mxu0 0.0
      %236 = vmatpush1.msra.mxu0 %v207
      %237 = vmatprep.subr.mxu0 0.0
      %238 = vmatpush1.msra.mxu0 %v206
      %239 = vmatprep.subr.mxu0 0.0
      %240 = vmatpush1.msra.mxu0 %v205
      %241 = vmatprep.subr.mxu0 0.0
      %242 = vmatpush1.msra.mxu0 %v204
      %243 = vmatprep.subr.mxu0 0.0
      %244 = vmatpush1.msra.mxu0 %v203
      %245 = vmatprep.subr.mxu0 0.0
      %246 = vmatpush1.msra.mxu0 %v202
      %247 = vmatprep.subr.mxu0 0.0
      %248 = vmatpush1.msra.mxu0 %v201
      %249 = vmatprep.subr.mxu0 0.0
      %250 = vmatpush2.msra.mxu0 0.0
      %251 = vmatprep.subr.mxu0 0.0
      %252 = vmatpush2.msra.mxu0 0.0
      %253 = vmatprep.subr.mxu0 0.0
      %254 = vmatpush2.msra.mxu0 0.0
      %255 = vmatprep.subr.mxu0 0.0
      %256 = vmatpush2.msra.mxu0 0.0
      %257 = vmatprep.subr.mxu0 0.0
      %258 = vmatpush2.msra.mxu0 0.0
      %259 = vmatprep.subr.mxu0 0.0
      %260 = vmatpush2.msra.mxu0 0.0
      %261 = vmatprep.subr.mxu0 0.0
      %262 = vmatpush2.msra.mxu0 0.0
      %263 = vmatprep.subr.mxu0 0.0
      %264 = vmatpush2.msra.mxu0 0.0
      %265 = vmatprep.subr.mxu0 0.0
      %266 = vmatpush2.msra.mxu0 0.0
      %267 = vmatprep.subr.mxu0 0.0
      %268 = vmatpush2.msra.mxu0 0.0
      %269 = vmatprep.subr.mxu0 0.0
      %270 = vmatpush2.msra.mxu0 0.0
      %271 = vmatprep.subr.mxu0 0.0
      %272 = vmatpush2.msra.mxu0 0.0
      %273 = vmatprep.subr.mxu0 0.0
      %274 = vmatpush2.msra.mxu0 0.0
      %275 = vmatprep.subr.mxu0 0.0
      %276 = vmatpush2.msra.mxu0 0.0
      %277 = vmatprep.subr.mxu0 0.0
      %278 = vmatpush2.msra.mxu0 0.0
      %279 = vmatprep.subr.mxu0 0.0
      %280 = vmatpush2.msra.mxu0 0.0
      %281 = vmatprep.mubr.f32.mxu0 0.0
      %282 = vmatmul.mubr.f32.gmra.mxu0 %v185
      %v283 = vpop.f32.mrf.mxu0
      %v284 = vadd.f32 0.0, %v283
      %v285 = vpop.f32.mrf.mxu0
      %286 = vmatprep.mubr.f32.mxu0 0.0
      %287 = vmatmul.mubr.f32.gmra.mxu0 %v186
      %v288 = vpop.f32.mrf.mxu0
      %v289 = vadd.f32 0.0, %v288
      %v290 = vpop.f32.mrf.mxu0
      %291 = vmatprep.mubr.f32.mxu0 0.0
      %292 = vmatmul.mubr.f32.gmra.mxu0 %v187
      %v293 = vpop.f32.mrf.mxu0
      %v294 = vadd.f32 0.0, %v293
      %v295 = vpop.f32.mrf.mxu0
      %296 = vmatprep.mubr.f32.mxu0 0.0
      %297 = vmatmul.mubr.f32.gmra.mxu0 %v188
      %v298 = vpop.f32.mrf.mxu0
      %v299 = vadd.f32 0.0, %v298
      %v300 = vpop.f32.mrf.mxu0
      %301 = vmatprep.mubr.f32.mxu0 0.0
      %302 = vmatmul.mubr.f32.gmra.mxu0 %v189
      %v303 = vpop.f32.mrf.mxu0
      %v304 = vadd.f32 0.0, %v303
      %v305 = vpop.f32.mrf.mxu0
      %306 = vmatprep.mubr.f32.mxu0 0.0
      %307 = vmatmul.mubr.f32.gmra.mxu0 %v190
      %v308 = vpop.f32.mrf.mxu0
      %v309 = vadd.f32 0.0, %v308
      %v310 = vpop.f32.mrf.mxu0
      %311 = vmatprep.mubr.f32.mxu0 0.0
      %312 = vmatmul.mubr.f32.gmra.mxu0 %v191
      %v313 = vpop.f32.mrf.mxu0
      %v314 = vadd.f32 0.0, %v313
      %v315 = vpop.f32.mrf.mxu0
      %316 = vmatprep.mubr.f32.mxu0 0.0
      %317 = vmatmul.mubr.f32.gmra.mxu0 %v192
      %v318 = vpop.f32.mrf.mxu0
      %v319 = vadd.f32 0.0, %v318
      %v320 = vpop.f32.mrf.mxu0
      %321 = vmatprep.mubr.f32.mxu0 0.0
      %322 = vmatmul.mubr.f32.gmra.mxu0 %v193
      %v323 = vpop.f32.mrf.mxu0
      %v324 = vadd.f32 0.0, %v323
      %v325 = vpop.f32.mrf.mxu0
      %326 = vmatprep.mubr.f32.mxu0 0.0
      %327 = vmatmul.mubr.f32.gmra.mxu0 %v194
      %v328 = vpop.f32.mrf.mxu0
      %v329 = vadd.f32 0.0, %v328
      %v330 = vpop.f32.mrf.mxu0
      %331 = vmatprep.mubr.f32.mxu0 0.0
      %332 = vmatmul.mubr.f32.gmra.mxu0 %v195
      %v333 = vpop.f32.mrf.mxu0
      %v334 = vadd.f32 0.0, %v333
      %v335 = vpop.f32.mrf.mxu0
      %336 = vmatprep.mubr.f32.mxu0 0.0
      %337 = vmatmul.mubr.f32.gmra.mxu0 %v196
      %v338 = vpop.f32.mrf.mxu0
      %v339 = vadd.f32 0.0, %v338
      %v340 = vpop.f32.mrf.mxu0
      %341 = vmatprep.mubr.f32.mxu0 0.0
      %342 = vmatmul.mubr.f32.gmra.mxu0 %v197
      %v343 = vpop.f32.mrf.mxu0
      %v344 = vadd.f32 0.0, %v343
      %v345 = vpop.f32.mrf.mxu0
      %346 = vmatprep.mubr.f32.mxu0 0.0
      %347 = vmatmul.mubr.f32.gmra.mxu0 %v198
      %v348 = vpop.f32.mrf.mxu0
      %v349 = vadd.f32 0.0, %v348
      %v350 = vpop.f32.mrf.mxu0
      %351 = vmatprep.mubr.f32.mxu0 0.0
      %352 = vmatmul.mubr.f32.gmra.mxu0 %v199
      %v353 = vpop.f32.mrf.mxu0
      %v354 = vadd.f32 0.0, %v353
      %v355 = vpop.f32.mrf.mxu0
      %356 = vmatprep.mubr.f32.mxu0 0.0
      %357 = vmatmul.mubr.f32.gmra.mxu0 %v200
      %v358 = vpop.f32.mrf.mxu0
      %v359 = vadd.f32 0.0, %v358
      %v360 = vpop.f32.mrf.mxu0
      %361 = vdwg.mxu0
      %362 = vst [vmem:[%s179] sm:$0xff] %v284
      %363 = vst [vmem:[%s179 + $0x8] sm:$0xff] %v289
      %364 = vst [vmem:[%s179 + $0x10] sm:$0xff] %v294
      %365 = vst [vmem:[%s179 + $0x18] sm:$0xff] %v299
      %366 = vst [vmem:[%s179 + $0x20] sm:$0xff] %v304
      %367 = vst [vmem:[%s179 + $0x28] sm:$0xff] %v309
      %368 = vst [vmem:[%s179 + $0x30] sm:$0xff] %v314
      %369 = vst [vmem:[%s179 + $0x38] sm:$0xff] %v319
      %370 = vst [vmem:[%s179 + $0x40] sm:$0xff] %v324
      %371 = vst [vmem:[%s179 + $0x48] sm:$0xff] %v329
      %372 = vst [vmem:[%s179 + $0x50] sm:$0xff] %v334
      %373 = vst [vmem:[%s179 + $0x58] sm:$0xff] %v339
      %374 = vst [vmem:[%s179 + $0x60] sm:$0xff] %v344
      %375 = vst [vmem:[%s179 + $0x68] sm:$0xff] %v349
      %376 = vst [vmem:[%s179 + $0x70] sm:$0xff] %v354
      %377 = vst [vmem:[%s179 + $0x78] sm:$0xff] %v359
      %v378 = vadd.f32 %v284, %v289
      %v379 = vadd.f32 %v378, %v294
      %v380 = vadd.f32 %v379, %v299
      %v381 = vadd.f32 %v380, %v304
      %v382 = vadd.f32 %v381, %v309
      %v383 = vadd.f32 %v382, %v314
      %v384 = vadd.f32 %v383, %v319
      %v385 = vadd.f32 %v384, %v324
      %v386 = vadd.f32 %v385, %v329
      %v387 = vadd.f32 %v386, %v334
      %v388 = vadd.f32 %v387, %v339
      %v389 = vadd.f32 %v388, %v344
      %v390 = vadd.f32 %v389, %v349
      %v391 = vadd.f32 %v390, %v354
      %v392 = vadd.f32 %v391, %v359
      %v393 = vrot.slane %v392, 4
      %v394 = vadd.f32 %v392, %v393
      %v395 = vrot.slane %v394, 2
      %v396 = vadd.f32 %v394, %v395
      %v397 = vrot.slane %v396, 1
      %v398 = vadd.f32 %v396, %v397
      %v399 = vmul.f32 %v284, %v284
      %v400 = vmul.f32 %v289, %v289
      %v401 = vmul.f32 %v294, %v294
      %v402 = vmul.f32 %v299, %v299
      %v403 = vmul.f32 %v304, %v304
      %v404 = vmul.f32 %v309, %v309
      %v405 = vmul.f32 %v314, %v314
      %v406 = vmul.f32 %v319, %v319
      %v407 = vmul.f32 %v324, %v324
      %v408 = vmul.f32 %v329, %v329
      %v409 = vmul.f32 %v334, %v334
      %v410 = vmul.f32 %v339, %v339
      %v411 = vmul.f32 %v344, %v344
      %v412 = vmul.f32 %v349, %v349
      %v413 = vmul.f32 %v354, %v354
      %v414 = vmul.f32 %v359, %v359
      %v415 = vadd.f32 %v399, %v400
      %v416 = vadd.f32 %v415, %v401
      %v417 = vadd.f32 %v416, %v402
      %v418 = vadd.f32 %v417, %v403
      %v419 = vadd.f32 %v418, %v404
      %v420 = vadd.f32 %v419, %v405
      %v421 = vadd.f32 %v420, %v406
      %v422 = vadd.f32 %v421, %v407
      %v423 = vadd.f32 %v422, %v408
      %v424 = vadd.f32 %v423, %v409
      %v425 = vadd.f32 %v424, %v410
      %v426 = vadd.f32 %v425, %v411
      %v427 = vadd.f32 %v426, %v412
      %v428 = vadd.f32 %v427, %v413
      %v429 = vadd.f32 %v428, %v414
      %v430 = vrot.slane %v429, 4
      %v431 = vadd.f32 %v429, %v430
      %v432 = vrot.slane %v431, 2
      %v433 = vadd.f32 %v431, %v432
      %v434 = vrot.slane %v433, 1
      %v435 = vadd.f32 %v433, %v434
      %vm436 = vcmask 1040384
      %v437 = vsel %vm436, %v398, %v435
      %vm438 = vcmask 1041408
      %v439 = vsel %vm438, %v437, 0.0
      %440 = vst [vmem:[%s184] sm:$0xff] %v439
      %s441 = smul.u32 16, %s15
      %p442 = scmp.lt.s32.totalorder %s441, 63
      %s443 = scalar_select %p442, %s441, 63
      %s444 = smul.addr %s443, 8
      %s445 = scalar_lea.vmem %s2, %s444
      %p446 = scmp.lt.s32.totalorder %s15, 3
      %s447 = scalar_select %p446, %s15, 3
      %s448 = smul.addr %s447, 8
      %s449 = scalar_lea.vmem %s3, %s448
      // Predicated region
      $region29: #{basic_block_forward.4} parent=27 // pred_check
        %p450 = pneg %p80
      $region30: #{basic_block_forward.4} parent=27 // pred_check_branch
        %452 = sbr.rel (%p450) target = $region32
      $region31: #{basic_block_forward.4} parent=27 // pred_region
        %s453 = smul.u32 16, %s15
      $region32: #{basic_block_forward.4} parent=27 // pred_fallthru
        _
      // Predicated region
      $region33: #{basic_block_forward.4} parent=27 // pred_check
        %p454 = pneg %p106
      $region34: #{basic_block_forward.4} parent=27 // pred_check_branch
        %456 = sbr.rel (%p454) target = $region36
      $region35: #{basic_block_forward.4} parent=27 // pred_region
        _
      $region36: #{basic_block_forward.4} parent=27 // pred_fallthru
        _
    $region28: #{basic_block_forward.4} parent=5 // pred_fallthru
      _
    %p457 = scmp.le.s32.totalorder 2, %s10
    // Predicated region
    $region37: #{basic_block_forward.4} parent=5 // pred_check
      %p458 = pneg %p457
    $region38: #{basic_block_forward.4} parent=5 // pred_check_branch
      %460 = sbr.rel (%p458) target = $region40
    $region39: #{basic_block_forward.4} parent=5 // pred_region
      %s461 = ssub.s32 %s10, 2
      // Predicated region
      $region41: #{basic_block_forward.4} parent=39 // pred_check
        %p462 = pneg %p86
      $region42: #{basic_block_forward.4} parent=39 // pred_check_branch
        %464 = sbr.rel (%p462) target = $region44
      $region43: #{basic_block_forward.4} parent=39 // pred_region
        %s465 = smul.u32 16, %s16
        %p466 = scmp.lt.s32.totalorder %s465, 63
        %s467 = scalar_select %p466, %s465, 63
        %s468 = smul.addr %s467, 8
        %s469 = scalar_lea.vmem %s2, %s468
      $region44: #{basic_block_forward.4} parent=39 // pred_fallthru
        _
      // Predicated region
      $region45: #{basic_block_forward.4} parent=39 // pred_check
        %p470 = pneg %p112
      $region46: #{basic_block_forward.4} parent=39 // pred_check_branch
        %472 = sbr.rel (%p470) target = $region48
      $region47: #{basic_block_forward.4} parent=39 // pred_region
        %p473 = scmp.lt.s32.totalorder %s16, 3
        %s474 = scalar_select %p473, %s16, 3
        %s475 = smul.addr %s474, 8
        %s476 = scalar_lea.vmem %s3, %s475
      $region48: #{basic_block_forward.4} parent=39 // pred_fallthru
        _
    $region40: #{basic_block_forward.4} parent=5 // pred_fallthru
      _
  $region6: #{basic_block_forward.4} parent=0 // loop_footer
    %s14 = sadd.s32 1, %s10
  $region7: #{basic_block_forward.4} parent=0 // loop_footer_branch
    %9 = sbr.rel target = $region3
  $region8: #{basic_block_forward.4} parent=0 // loop_exit
    _

// kernel: basic_block_forward.5
$region0: #{basic_block_forward.5}
  #allocation0 [shape = 'u32[]', space=smem, size = 0x4, offset = 0x4, fixed_abs, tag = 'smem constant byte address 0x4 - core index']
  #allocation1 [shape = 'u32[144,128]{1,0:T(1,128)}', space=vmem, size = 0x12000, scoped, tag = 'internal scratch']
  %s0 = inlined_call_operand.vmem [shape: f32[512,128], index: 0, kind: input, shape index: {}]
  %s1 = inlined_call_operand.vmem [shape: f32[1,128], index: 1, kind: input, shape index: {}]
  %s2 = inlined_call_operand.vmem [shape: f32[1,128], index: 2, kind: input, shape index: {}]
  %s3 = inlined_call_operand.vmem [shape: f32[512,128], index: 3, kind: output, shape index: {}]
  %s4 = sld [smem:[#allocation0]]
  $region45: #{basic_block_forward.5} parent=0
    _
  %s6 = ssub.s32 1, %s4
  %s7 = scalar_select 0, %s6, %s4
  loop: start=0, step=1, limit=6
  $region2: #{basic_block_forward.5} parent=0 // loop_pre_header
    _
  $region3: #{basic_block_forward.5} parent=0 // loop_header
    %s9 = sphi 0, %s13
    %p10 = scmp.ge.s32.totalorder %s9, 6
    %s19 = sphi 0, %s21
    %s22 = sphi 0, %s19
    %s23 = sphi 0, %s22
    %s39 = sphi 0, %s23
    %s43 = sphi 0, %s43
    %s45 = sphi 0, %s43
    %s46 = sphi 0, %s45
    %s60 = sphi 0, %s46
    %s64 = sphi 0, %s64
    %s66 = sphi 0, %s64
    %s67 = sphi 0, %s66
    %s81 = sphi 0, %s67
    %s87 = sphi 0, %s89
    %s90 = sphi 0, %s87
    %s91 = sphi 0, %s90
    %s107 = sphi 0, %s91
  $region4: #{basic_block_forward.5} parent=0 // loop_header_branch
    %12 = sbr.rel (%p10) target = $region8
  $region5: #{basic_block_forward.5} parent=0 // loop_body
    %s14 = ssub.s32 %s9, 1
    %s15 = ssub.s32 %s9, 2
    %s16 = sadd.s32 %s9, 1
    %s17 = ssub.s32 %s9, %s16
    %p18 = scmp.eq.s32.totalorder %s17, 0
    %s20 = sadd.s32 %s19, 1
    %s21 = scalar_select %p18, %s19, %s20
    %p24 = pneg %p18
    %p25 = scmp.eq.s32.totalorder %s9, 3
    %p26 = por %p24, %p25
    %p27 = scmp.ne.s32.totalorder %s19, %s22
    %p28 = scmp.eq.s32.totalorder %s9, 0
    %p29 = por %p27, %p28
    %p30 = scmp.ne.s32.totalorder %s19, %s22
    %p31 = scmp.eq.s32.totalorder %s14, 3
    %p32 = por %p30, %p31
    %p33 = scmp.ne.s32.totalorder %s22, %s23
    %p34 = scmp.eq.s32.totalorder %s14, 0
    %p35 = por %p33, %p34
    %p36 = scmp.ne.s32.totalorder %s22, %s23
    %p37 = scmp.eq.s32.totalorder %s15, 3
    %p38 = por %p36, %p37
    %p40 = scmp.ne.s32.totalorder %s23, %s39
    %p41 = scmp.eq.s32.totalorder %s15, 0
    %p42 = por %p40, %p41
    %s44 = sadd.s32 %s43, 1
    %p47 = scmp.eq.s32.totalorder %s9, 3
    %p48 = scmp.ne.s32.totalorder %s43, %s45
    %p49 = scmp.eq.s32.totalorder %s9, 0
    %p50 = por %p48, %p49
    %p51 = scmp.ne.s32.totalorder %s43, %s45
    %p52 = scmp.eq.s32.totalorder %s14, 3
    %p53 = por %p51, %p52
    %p54 = scmp.ne.s32.totalorder %s45, %s46
    %p55 = scmp.eq.s32.totalorder %s14, 0
    %p56 = por %p54, %p55
    %p57 = scmp.ne.s32.totalorder %s45, %s46
    %p58 = scmp.eq.s32.totalorder %s15, 3
    %p59 = por %p57, %p58
    %p61 = scmp.ne.s32.totalorder %s46, %s60
    %p62 = scmp.eq.s32.totalorder %s15, 0
    %p63 = por %p61, %p62
    %s65 = sadd.s32 %s64, 1
    %p68 = scmp.eq.s32.totalorder %s9, 3
    %p69 = scmp.ne.s32.totalorder %s64, %s66
    %p70 = scmp.eq.s32.totalorder %s9, 0
    %p71 = por %p69, %p70
    %p72 = scmp.ne.s32.totalorder %s64, %s66
    %p73 = scmp.eq.s32.totalorder %s14, 3
    %p74 = por %p72, %p73
    %p75 = scmp.ne.s32.totalorder %s66, %s67
    %p76 = scmp.eq.s32.totalorder %s14, 0
    %p77 = por %p75, %p76
    %p78 = scmp.ne.s32.totalorder %s66, %s67
    %p79 = scmp.eq.s32.totalorder %s15, 3
    %p80 = por %p78, %p79
    %p82 = scmp.ne.s32.totalorder %s67, %s81
    %p83 = scmp.eq.s32.totalorder %s15, 0
    %p84 = por %p82, %p83
    %s85 = ssub.s32 %s9, %s16
    %p86 = scmp.eq.s32.totalorder %s85, 0
    %s88 = sadd.s32 %s87, 1
    %s89 = scalar_select %p86, %s87, %s88
    %p92 = pneg %p86
    %p93 = scmp.eq.s32.totalorder %s9, 3
    %p94 = por %p92, %p93
    %p95 = scmp.ne.s32.totalorder %s87, %s90
    %p96 = scmp.eq.s32.totalorder %s9, 0
    %p97 = por %p95, %p96
    %p98 = scmp.ne.s32.totalorder %s87, %s90
    %p99 = scmp.eq.s32.totalorder %s14, 3
    %p100 = por %p98, %p99
    %p101 = scmp.ne.s32.totalorder %s90, %s91
    %p102 = scmp.eq.s32.totalorder %s14, 0
    %p103 = por %p101, %p102
    %p104 = scmp.ne.s32.totalorder %s90, %s91
    %p105 = scmp.eq.s32.totalorder %s15, 3
    %p106 = por %p104, %p105
    %p108 = scmp.ne.s32.totalorder %s91, %s107
    %p109 = scmp.eq.s32.totalorder %s15, 0
    %p110 = por %p108, %p109
    %p111 = scmp.le.s32.totalorder 1, %s9
    %p112 = scmp.lt.s32.totalorder %s9, 5
    %p113 = pnand %p111, %p112
    %p114 = pneg %p113
    // Predicated region
    $region9: #{basic_block_forward.5} parent=5 // pred_check
      _
    $region10: #{basic_block_forward.5} parent=5 // pred_check_branch
      %116 = sbr.rel (%p113) target = $region12
    $region11: #{basic_block_forward.5} parent=5 // pred_region
      %s117 = ssub.s32 %s9, 1
      // Predicated region
      $region13: #{basic_block_forward.5} parent=11 // pred_check
        %p118 = pneg %p56
      $region14: #{basic_block_forward.5} parent=11 // pred_check_branch
        %120 = sbr.rel (%p118) target = $region16
      $region15: #{basic_block_forward.5} parent=11 // pred_region
        _
      $region16: #{basic_block_forward.5} parent=11 // pred_fallthru
        _
      // Predicated region
      $region17: #{basic_block_forward.5} parent=11 // pred_check
        %p121 = pneg %p77
      $region18: #{basic_block_forward.5} parent=11 // pred_check_branch
        %123 = sbr.rel (%p121) target = $region20
      $region19: #{basic_block_forward.5} parent=11 // pred_region
        _
      $region20: #{basic_block_forward.5} parent=11 // pred_fallthru
        _
    $region12: #{basic_block_forward.5} parent=5 // pred_fallthru
      _
    %p124 = scmp.lt.s32.totalorder %s9, 4
    // Predicated region
    $region21: #{basic_block_forward.5} parent=5 // pred_check
      %p125 = pneg %p124
    $region22: #{basic_block_forward.5} parent=5 // pred_check_branch
      %127 = sbr.rel (%p125) target = $region24
    $region23: #{basic_block_forward.5} parent=5 // pred_region
      // Predicated region
      $region25: #{basic_block_forward.5} parent=23 // pred_check
        %p128 = pneg %p29
      $region26: #{basic_block_forward.5} parent=23 // pred_check_branch
        %130 = sbr.rel (%p128) target = $region28
      $region27: #{basic_block_forward.5} parent=23 // pred_region
        %s131 = smul.u32 16, %s9
        %p132 = scmp.lt.s32.totalorder %s131, 63
        %s133 = scalar_select %p132, %s131, 63
        %s134 = smul.addr %s133, 8
        %s135 = scalar_lea.vmem %s0, %s134
        %s136 = smul.u32 16, %s9
      $region28: #{basic_block_forward.5} parent=23 // pred_fallthru
        _
    $region24: #{basic_block_forward.5} parent=5 // pred_fallthru
      _
    %p137 = scmp.le.s32.totalorder 1, %s9
    %p138 = scmp.lt.s32.totalorder %s9, 5
    %p139 = pnand %p137, %p138
    %p140 = pneg %p139
    // Predicated region
    $region29: #{basic_block_forward.5} parent=5 // pred_check
      _
    $region30: #{basic_block_forward.5} parent=5 // pred_check_branch
      %142 = sbr.rel (%p139) target = $region32
    $region31: #{basic_block_forward.5} parent=5 // pred_region
      %s143 = ssub.s32 %s9, 1
      %s144 = smul.u32 16, %s14
      %p145 = scmp.lt.s32.totalorder %s144, 63
      %s146 = scalar_select %p145, %s144, 63
      %s147 = smul.addr %s146, 8
      %s148 = scalar_lea.vmem %s0, %s147
      %p149 = pneg %p35
      %p150 = pneg %p32
      %p151 = pneg %p56
      %p152 = pneg %p53
      %p153 = pneg %p77
      %p154 = pneg %p74
      %p155 = pneg %p103
      %p156 = pneg %p100
      %s157 = smul.u32 16, %s14
      %p158 = scmp.lt.s32.totalorder %s157, 63
      %s159 = scalar_select %p158, %s157, 63
      %s160 = smul.addr %s159, 8
      %s161 = scalar_lea.vmem %s3, %s160
      %s162 = smul.u32 16, %s14
      %p163 = scmp.lt.s32.totalorder %s162, 63
      %s164 = scalar_select %p163, %s162, 63
      %s165 = smul.addr %s164, 8
      %s166 = scalar_lea.vmem %s0, %s165
      %s167 = smul.u32 16, %s14
      %s168 = smul.u32 16, %s14
      %p169 = scmp.lt.s32.totalorder %s168, 63
      %s170 = scalar_select %p169, %s168, 63
      %s171 = smul.addr %s170, 8
      %s172 = scalar_lea.vmem %s3, %s171
      %s173 = smul.u32 16, %s14
      %v174 = vld [vmem:[%s166] sm:$0xff]
      %v175 = vld [vmem:[%s166 + $0x8] sm:$0xff]
      %v176 = vld [vmem:[%s166 + $0x10] sm:$0xff]
      %v177 = vld [vmem:[%s166 + $0x18] sm:$0xff]
      %v178 = vld [vmem:[%s166 + $0x20] sm:$0xff]
      %v179 = vld [vmem:[%s166 + $0x28] sm:$0xff]
      %v180 = vld [vmem:[%s166 + $0x30] sm:$0xff]
      %v181 = vld [vmem:[%s166 + $0x38] sm:$0xff]
      %v182 = vld [vmem:[%s166 + $0x40] sm:$0xff]
      %v183 = vld [vmem:[%s166 + $0x48] sm:$0xff]
      %v184 = vld [vmem:[%s166 + $0x50] sm:$0xff]
      %v185 = vld [vmem:[%s166 + $0x58] sm:$0xff]
      %v186 = vld [vmem:[%s166 + $0x60] sm:$0xff]
      %v187 = vld [vmem:[%s166 + $0x68] sm:$0xff]
      %v188 = vld [vmem:[%s166 + $0x70] sm:$0xff]
      %v189 = vld [vmem:[%s166 + $0x78] sm:$0xff]
      %v190 = vld [vmem:[%s1] sm:$0x1]
      %v192 = vlaneseq
      %v193 = vshrl.u32 %v192, 7
      %v194 = vsub.s32 0, %v193
      %v195 = vrot.slane %v190, %v194
      %v197 = vmul.f32 %v174, %v195
      %v198 = vmul.f32 %v175, %v195
      %v199 = vmul.f32 %v176, %v195
      %v200 = vmul.f32 %v177, %v195
      %v201 = vmul.f32 %v178, %v195
      %v202 = vmul.f32 %v179, %v195
      %v203 = vmul.f32 %v180, %v195
      %v204 = vmul.f32 %v181, %v195
      %v205 = vmul.f32 %v182, %v195
      %v206 = vmul.f32 %v183, %v195
      %v207 = vmul.f32 %v184, %v195
      %v208 = vmul.f32 %v185, %v195
      %v209 = vmul.f32 %v186, %v195
      %v210 = vmul.f32 %v187, %v195
      %v211 = vmul.f32 %v188, %v195
      %v212 = vmul.f32 %v189, %v195
      %v213 = vld [vmem:[%s2] sm:$0x1]
      %v215 = vlaneseq
      %v216 = vshrl.u32 %v215, 7
      %v217 = vsub.s32 0, %v216
      %v218 = vrot.slane %v213, %v217
      %v220 = vadd.f32 %v197, %v218
      %v221 = vadd.f32 %v198, %v218
      %v222 = vadd.f32 %v199, %v218
      %v223 = vadd.f32 %v200, %v218
      %v224 = vadd.f32 %v201, %v218
      %v225 = vadd.f32 %v202, %v218
      %v226 = vadd.f32 %v203, %v218
      %v227 = vadd.f32 %v204, %v218
      %v228 = vadd.f32 %v205, %v218
      %v229 = vadd.f32 %v206, %v218
      %v230 = vadd.f32 %v207, %v218
      %v231 = vadd.f32 %v208, %v218
      %v232 = vadd.f32 %v209, %v218
      %v233 = vadd.f32 %v210, %v218
      %v234 = vadd.f32 %v211, %v218
      %v235 = vadd.f32 %v212, %v218
      %v236 = vmax.f32 %v220, 0.0
      %v237 = vmax.f32 %v221, 0.0
      %v238 = vmax.f32 %v222, 0.0
      %v239 = vmax.f32 %v223, 0.0
      %v240 = vmax.f32 %v224, 0.0
      %v241 = vmax.f32 %v225, 0.0
      %v242 = vmax.f32 %v226, 0.0
      %v243 = vmax.f32 %v227, 0.0
      %v244 = vmax.f32 %v228, 0.0
      %v245 = vmax.f32 %v229, 0.0
      %v246 = vmax.f32 %v230, 0.0
      %v247 = vmax.f32 %v231, 0.0
      %v248 = vmax.f32 %v232, 0.0
      %v249 = vmax.f32 %v233, 0.0
      %v250 = vmax.f32 %v234, 0.0
      %v251 = vmax.f32 %v235, 0.0
      %252 = vst [vmem:[%s172] sm:$0xff] %v236
      %253 = vst [vmem:[%s172 + $0x8] sm:$0xff] %v237
      %254 = vst [vmem:[%s172 + $0x10] sm:$0xff] %v238
      %255 = vst [vmem:[%s172 + $0x18] sm:$0xff] %v239
      %256 = vst [vmem:[%s172 + $0x20] sm:$0xff] %v240
      %257 = vst [vmem:[%s172 + $0x28] sm:$0xff] %v241
      %258 = vst [vmem:[%s172 + $0x30] sm:$0xff] %v242
      %259 = vst [vmem:[%s172 + $0x38] sm:$0xff] %v243
      %260 = vst [vmem:[%s172 + $0x40] sm:$0xff] %v244
      %261 = vst [vmem:[%s172 + $0x48] sm:$0xff] %v245
      %262 = vst [vmem:[%s172 + $0x50] sm:$0xff] %v246
      %263 = vst [vmem:[%s172 + $0x58] sm:$0xff] %v247
      %264 = vst [vmem:[%s172 + $0x60] sm:$0xff] %v248
      %265 = vst [vmem:[%s172 + $0x68] sm:$0xff] %v249
      %266 = vst [vmem:[%s172 + $0x70] sm:$0xff] %v250
      %267 = vst [vmem:[%s172 + $0x78] sm:$0xff] %v251
      %s268 = smul.u32 16, %s14
      %p269 = scmp.lt.s32.totalorder %s268, 63
      %s270 = scalar_select %p269, %s268, 63
      %s271 = smul.addr %s270, 8
      %s272 = scalar_lea.vmem %s3, %s271
      // Predicated region
      $region33: #{basic_block_forward.5} parent=31 // pred_check
        %p273 = pneg %p100
      $region34: #{basic_block_forward.5} parent=31 // pred_check_branch
        %275 = sbr.rel (%p273) target = $region36
      $region35: #{basic_block_forward.5} parent=31 // pred_region
        %s276 = smul.u32 16, %s14
      $region36: #{basic_block_forward.5} parent=31 // pred_fallthru
        _
    $region32: #{basic_block_forward.5} parent=5 // pred_fallthru
      _
    %p277 = scmp.le.s32.totalorder 2, %s9
    // Predicated region
    $region37: #{basic_block_forward.5} parent=5 // pred_check
      %p278 = pneg %p277
    $region38: #{basic_block_forward.5} parent=5 // pred_check_branch
      %280 = sbr.rel (%p278) target = $region40
    $region39: #{basic_block_forward.5} parent=5 // pred_region
      %s281 = ssub.s32 %s9, 2
      // Predicated region
      $region41: #{basic_block_forward.5} parent=39 // pred_check
        %p282 = pneg %p106
      $region42: #{basic_block_forward.5} parent=39 // pred_check_branch
        %284 = sbr.rel (%p282) target = $region44
      $region43: #{basic_block_forward.5} parent=39 // pred_region
        %s285 = smul.u32 16, %s15
        %p286 = scmp.lt.s32.totalorder %s285, 63
        %s287 = scalar_select %p286, %s285, 63
        %s288 = smul.addr %s287, 8
        %s289 = scalar_lea.vmem %s3, %s288
      $region44: #{basic_block_forward.5} parent=39 // pred_fallthru
        _
    $region40: #{basic_block_forward.5} parent=5 // pred_fallthru
      _
  $region6: #{basic_block_forward.5} parent=0 // loop_footer
    %s13 = sadd.s32 1, %s9
  $region7: #{basic_block_forward.5} parent=0 // loop_footer_branch
    %8 = sbr.rel target = $region3
  $region8: #{basic_block_forward.5} parent=0 // loop_exit
    _

// kernel: basic_block_forward.7
$region0: #{basic_block_forward.7}
  #allocation0 [shape = 'u32[]', space=smem, size = 0x4, offset = 0x4, fixed_abs, tag = 'smem constant byte address 0x4 - core index']
  #allocation1 [shape = 'u32[144,128]{1,0:T(1,128)}', space=vmem, size = 0x12000, scoped, tag = 'internal scratch']
  %s0 = inlined_call_operand.vmem [shape: f32[512,128], index: 0, kind: input, shape index: {}]
  %s1 = inlined_call_operand.vmem [shape: f32[1,128], index: 1, kind: input, shape index: {}]
  %s2 = inlined_call_operand.vmem [shape: f32[1,128], index: 2, kind: input, shape index: {}]
  %s3 = inlined_call_operand.vmem [shape: f32[512,128], index: 3, kind: input, shape index: {}, may-alias: {3,6}]
  %s4 = inlined_call_operand.vmem [shape: f32[1,128], index: 4, kind: input, shape index: {}]
  %s5 = inlined_call_operand.vmem [shape: f32[1,128], index: 5, kind: input, shape index: {}]
  %s6 = inlined_call_operand.vmem [shape: f32[512,128], index: 6, kind: output, shape index: {}, may-alias: {3,6}]
  %s7 = sld [smem:[#allocation0]]
  $region57: #{basic_block_forward.7} parent=0
    _
  %s9 = ssub.s32 1, %s7
  %s10 = scalar_select 0, %s9, %s7
  loop: start=0, step=1, limit=6
  $region2: #{basic_block_forward.7} parent=0 // loop_pre_header
    _
  $region3: #{basic_block_forward.7} parent=0 // loop_header
    %s12 = sphi 0, %s16
    %p13 = scmp.ge.s32.totalorder %s12, 6
    %s22 = sphi 0, %s24
    %s25 = sphi 0, %s22
    %s26 = sphi 0, %s25
    %s42 = sphi 0, %s26
    %s46 = sphi 0, %s46
    %s48 = sphi 0, %s46
    %s49 = sphi 0, %s48
    %s63 = sphi 0, %s49
    %s67 = sphi 0, %s67
    %s69 = sphi 0, %s67
    %s70 = sphi 0, %s69
    %s84 = sphi 0, %s70
    %s90 = sphi 0, %s92
    %s93 = sphi 0, %s90
    %s94 = sphi 0, %s93
    %s110 = sphi 0, %s94
    %s114 = sphi 0, %s114
    %s116 = sphi 0, %s114
    %s117 = sphi 0, %s116
    %s131 = sphi 0, %s117
    %s135 = sphi 0, %s135
    %s137 = sphi 0, %s135
    %s138 = sphi 0, %s137
    %s152 = sphi 0, %s138
    %s158 = sphi 0, %s160
    %s161 = sphi 0, %s158
    %s162 = sphi 0, %s161
    %s178 = sphi 0, %s162
  $region4: #{basic_block_forward.7} parent=0 // loop_header_branch
    %15 = sbr.rel (%p13) target = $region8
  $region5: #{basic_block_forward.7} parent=0 // loop_body
    %s17 = ssub.s32 %s12, 1
    %s18 = ssub.s32 %s12, 2
    %s19 = sadd.s32 %s12, 1
    %s20 = ssub.s32 %s12, %s19
    %p21 = scmp.eq.s32.totalorder %s20, 0
    %s23 = sadd.s32 %s22, 1
    %s24 = scalar_select %p21, %s22, %s23
    %p27 = pneg %p21
    %p28 = scmp.eq.s32.totalorder %s12, 3
    %p29 = por %p27, %p28
    %p30 = scmp.ne.s32.totalorder %s22, %s25
    %p31 = scmp.eq.s32.totalorder %s12, 0
    %p32 = por %p30, %p31
    %p33 = scmp.ne.s32.totalorder %s22, %s25
    %p34 = scmp.eq.s32.totalorder %s17, 3
    %p35 = por %p33, %p34
    %p36 = scmp.ne.s32.totalorder %s25, %s26
    %p37 = scmp.eq.s32.totalorder %s17, 0
    %p38 = por %p36, %p37
    %p39 = scmp.ne.s32.totalorder %s25, %s26
    %p40 = scmp.eq.s32.totalorder %s18, 3
    %p41 = por %p39, %p40
    %p43 = scmp.ne.s32.totalorder %s26, %s42
    %p44 = scmp.eq.s32.totalorder %s18, 0
    %p45 = por %p43, %p44
    %s47 = sadd.s32 %s46, 1
    %p50 = scmp.eq.s32.totalorder %s12, 3
    %p51 = scmp.ne.s32.totalorder %s46, %s48
    %p52 = scmp.eq.s32.totalorder %s12, 0
    %p53 = por %p51, %p52
    %p54 = scmp.ne.s32.totalorder %s46, %s48
    %p55 = scmp.eq.s32.totalorder %s17, 3
    %p56 = por %p54, %p55
    %p57 = scmp.ne.s32.totalorder %s48, %s49
    %p58 = scmp.eq.s32.totalorder %s17, 0
    %p59 = por %p57, %p58
    %p60 = scmp.ne.s32.totalorder %s48, %s49
    %p61 = scmp.eq.s32.totalorder %s18, 3
    %p62 = por %p60, %p61
    %p64 = scmp.ne.s32.totalorder %s49, %s63
    %p65 = scmp.eq.s32.totalorder %s18, 0
    %p66 = por %p64, %p65
    %s68 = sadd.s32 %s67, 1
    %p71 = scmp.eq.s32.totalorder %s12, 3
    %p72 = scmp.ne.s32.totalorder %s67, %s69
    %p73 = scmp.eq.s32.totalorder %s12, 0
    %p74 = por %p72, %p73
    %p75 = scmp.ne.s32.totalorder %s67, %s69
    %p76 = scmp.eq.s32.totalorder %s17, 3
    %p77 = por %p75, %p76
    %p78 = scmp.ne.s32.totalorder %s69, %s70
    %p79 = scmp.eq.s32.totalorder %s17, 0
    %p80 = por %p78, %p79
    %p81 = scmp.ne.s32.totalorder %s69, %s70
    %p82 = scmp.eq.s32.totalorder %s18, 3
    %p83 = por %p81, %p82
    %p85 = scmp.ne.s32.totalorder %s70, %s84
    %p86 = scmp.eq.s32.totalorder %s18, 0
    %p87 = por %p85, %p86
    %s88 = ssub.s32 %s12, %s19
    %p89 = scmp.eq.s32.totalorder %s88, 0
    %s91 = sadd.s32 %s90, 1
    %s92 = scalar_select %p89, %s90, %s91
    %p95 = pneg %p89
    %p96 = scmp.eq.s32.totalorder %s12, 3
    %p97 = por %p95, %p96
    %p98 = scmp.ne.s32.totalorder %s90, %s93
    %p99 = scmp.eq.s32.totalorder %s12, 0
    %p100 = por %p98, %p99
    %p101 = scmp.ne.s32.totalorder %s90, %s93
    %p102 = scmp.eq.s32.totalorder %s17, 3
    %p103 = por %p101, %p102
    %p104 = scmp.ne.s32.totalorder %s93, %s94
    %p105 = scmp.eq.s32.totalorder %s17, 0
    %p106 = por %p104, %p105
    %p107 = scmp.ne.s32.totalorder %s93, %s94
    %p108 = scmp.eq.s32.totalorder %s18, 3
    %p109 = por %p107, %p108
    %p111 = scmp.ne.s32.totalorder %s94, %s110
    %p112 = scmp.eq.s32.totalorder %s18, 0
    %p113 = por %p111, %p112
    %s115 = sadd.s32 %s114, 1
    %p118 = scmp.eq.s32.totalorder %s12, 3
    %p119 = scmp.ne.s32.totalorder %s114, %s116
    %p120 = scmp.eq.s32.totalorder %s12, 0
    %p121 = por %p119, %p120
    %p122 = scmp.ne.s32.totalorder %s114, %s116
    %p123 = scmp.eq.s32.totalorder %s17, 3
    %p124 = por %p122, %p123
    %p125 = scmp.ne.s32.totalorder %s116, %s117
    %p126 = scmp.eq.s32.totalorder %s17, 0
    %p127 = por %p125, %p126
    %p128 = scmp.ne.s32.totalorder %s116, %s117
    %p129 = scmp.eq.s32.totalorder %s18, 3
    %p130 = por %p128, %p129
    %p132 = scmp.ne.s32.totalorder %s117, %s131
    %p133 = scmp.eq.s32.totalorder %s18, 0
    %p134 = por %p132, %p133
    %s136 = sadd.s32 %s135, 1
    %p139 = scmp.eq.s32.totalorder %s12, 3
    %p140 = scmp.ne.s32.totalorder %s135, %s137
    %p141 = scmp.eq.s32.totalorder %s12, 0
    %p142 = por %p140, %p141
    %p143 = scmp.ne.s32.totalorder %s135, %s137
    %p144 = scmp.eq.s32.totalorder %s17, 3
    %p145 = por %p143, %p144
    %p146 = scmp.ne.s32.totalorder %s137, %s138
    %p147 = scmp.eq.s32.totalorder %s17, 0
    %p148 = por %p146, %p147
    %p149 = scmp.ne.s32.totalorder %s137, %s138
    %p150 = scmp.eq.s32.totalorder %s18, 3
    %p151 = por %p149, %p150
    %p153 = scmp.ne.s32.totalorder %s138, %s152
    %p154 = scmp.eq.s32.totalorder %s18, 0
    %p155 = por %p153, %p154
    %s156 = ssub.s32 %s12, %s19
    %p157 = scmp.eq.s32.totalorder %s156, 0
    %s159 = sadd.s32 %s158, 1
    %s160 = scalar_select %p157, %s158, %s159
    %p163 = pneg %p157
    %p164 = scmp.eq.s32.totalorder %s12, 3
    %p165 = por %p163, %p164
    %p166 = scmp.ne.s32.totalorder %s158, %s161
    %p167 = scmp.eq.s32.totalorder %s12, 0
    %p168 = por %p166, %p167
    %p169 = scmp.ne.s32.totalorder %s158, %s161
    %p170 = scmp.eq.s32.totalorder %s17, 3
    %p171 = por %p169, %p170
    %p172 = scmp.ne.s32.totalorder %s161, %s162
    %p173 = scmp.eq.s32.totalorder %s17, 0
    %p174 = por %p172, %p173
    %p175 = scmp.ne.s32.totalorder %s161, %s162
    %p176 = scmp.eq.s32.totalorder %s18, 3
    %p177 = por %p175, %p176
    %p179 = scmp.ne.s32.totalorder %s162, %s178
    %p180 = scmp.eq.s32.totalorder %s18, 0
    %p181 = por %p179, %p180
    %p182 = scmp.le.s32.totalorder 1, %s12
    %p183 = scmp.lt.s32.totalorder %s12, 5
    %p184 = pnand %p182, %p183
    %p185 = pneg %p184
    // Predicated region
    $region9: #{basic_block_forward.7} parent=5 // pred_check
      _
    $region10: #{basic_block_forward.7} parent=5 // pred_check_branch
      %187 = sbr.rel (%p184) target = $region12
    $region11: #{basic_block_forward.7} parent=5 // pred_region
      %s188 = ssub.s32 %s12, 1
      // Predicated region
      $region13: #{basic_block_forward.7} parent=11 // pred_check
        %p189 = pneg %p59
      $region14: #{basic_block_forward.7} parent=11 // pred_check_branch
        %191 = sbr.rel (%p189) target = $region16
      $region15: #{basic_block_forward.7} parent=11 // pred_region
        _
      $region16: #{basic_block_forward.7} parent=11 // pred_fallthru
        _
      // Predicated region
      $region17: #{basic_block_forward.7} parent=11 // pred_check
        %p192 = pneg %p80
      $region18: #{basic_block_forward.7} parent=11 // pred_check_branch
        %194 = sbr.rel (%p192) target = $region20
      $region19: #{basic_block_forward.7} parent=11 // pred_region
        _
      $region20: #{basic_block_forward.7} parent=11 // pred_fallthru
        _
      // Predicated region
      $region21: #{basic_block_forward.7} parent=11 // pred_check
        %p195 = pneg %p127
      $region22: #{basic_block_forward.7} parent=11 // pred_check_branch
        %197 = sbr.rel (%p195) target = $region24
      $region23: #{basic_block_forward.7} parent=11 // pred_region
        _
      $region24: #{basic_block_forward.7} parent=11 // pred_fallthru
        _
      // Predicated region
      $region25: #{basic_block_forward.7} parent=11 // pred_check
        %p198 = pneg %p148
      $region26: #{basic_block_forward.7} parent=11 // pred_check_branch
        %200 = sbr.rel (%p198) target = $region28
      $region27: #{basic_block_forward.7} parent=11 // pred_region
        _
      $region28: #{basic_block_forward.7} parent=11 // pred_fallthru
        _
    $region12: #{basic_block_forward.7} parent=5 // pred_fallthru
      _
    %p201 = scmp.lt.s32.totalorder %s12, 4
    // Predicated region
    $region29: #{basic_block_forward.7} parent=5 // pred_check
      %p202 = pneg %p201
    $region30: #{basic_block_forward.7} parent=5 // pred_check_branch
      %204 = sbr.rel (%p202) target = $region32
    $region31: #{basic_block_forward.7} parent=5 // pred_region
      // Predicated region
      $region33: #{basic_block_forward.7} parent=31 // pred_check
        %p205 = pneg %p32
      $region34: #{basic_block_forward.7} parent=31 // pred_check_branch
        %207 = sbr.rel (%p205) target = $region36
      $region35: #{basic_block_forward.7} parent=31 // pred_region
        %s208 = smul.u32 16, %s12
        %p209 = scmp.lt.s32.totalorder %s208, 63
        %s210 = scalar_select %p209, %s208, 63
        %s211 = smul.addr %s210, 8
        %s212 = scalar_lea.vmem %s0, %s211
        %s213 = smul.u32 16, %s12
      $region36: #{basic_block_forward.7} parent=31 // pred_fallthru
        _
      // Predicated region
      $region37: #{basic_block_forward.7} parent=31 // pred_check
        %p214 = pneg %p100
      $region38: #{basic_block_forward.7} parent=31 // pred_check_branch
        %216 = sbr.rel (%p214) target = $region40
      $region39: #{basic_block_forward.7} parent=31 // pred_region
        %s217 = smul.u32 16, %s12
        %p218 = scmp.lt.s32.totalorder %s217, 63
        %s219 = scalar_select %p218, %s217, 63
        %s220 = smul.addr %s219, 8
        %s221 = scalar_lea.vmem %s3, %s220
        %s222 = smul.u32 16, %s12
      $region40: #{basic_block_forward.7} parent=31 // pred_fallthru
        _
    $region32: #{basic_block_forward.7} parent=5 // pred_fallthru
      _
    %p223 = scmp.le.s32.totalorder 1, %s12
    %p224 = scmp.lt.s32.totalorder %s12, 5
    %p225 = pnand %p223, %p224
    %p226 = pneg %p225
    // Predicated region
    $region41: #{basic_block_forward.7} parent=5 // pred_check
      _
    $region42: #{basic_block_forward.7} parent=5 // pred_check_branch
      %228 = sbr.rel (%p225) target = $region44
    $region43: #{basic_block_forward.7} parent=5 // pred_region
      %s229 = ssub.s32 %s12, 1
      %s230 = smul.u32 16, %s17
      %p231 = scmp.lt.s32.totalorder %s230, 63
      %s232 = scalar_select %p231, %s230, 63
      %s233 = smul.addr %s232, 8
      %s234 = scalar_lea.vmem %s0, %s233
      %p235 = pneg %p38
      %p236 = pneg %p35
      %p237 = pneg %p59
      %p238 = pneg %p56
      %p239 = pneg %p80
      %p240 = pneg %p77
      %s241 = smul.u32 16, %s17
      %p242 = scmp.lt.s32.totalorder %s241, 63
      %s243 = scalar_select %p242, %s241, 63
      %s244 = smul.addr %s243, 8
      %s245 = scalar_lea.vmem %s3, %s244
      %p246 = pneg %p106
      %p247 = pneg %p103
      %p248 = pneg %p127
      %p249 = pneg %p124
      %p250 = pneg %p148
      %p251 = pneg %p145
      %p252 = pneg %p174
      %p253 = pneg %p171
      %s254 = smul.u32 16, %s17
      %p255 = scmp.lt.s32.totalorder %s254, 63
      %s256 = scalar_select %p255, %s254, 63
      %s257 = smul.addr %s256, 8
      %s258 = scalar_lea.vmem %s6, %s257
      %s259 = smul.u32 16, %s17
      %p260 = scmp.lt.s32.totalorder %s259, 63
      %s261 = scalar_select %p260, %s259, 63
      %s262 = smul.addr %s261, 8
      %s263 = scalar_lea.vmem %s0, %s262
      %s264 = smul.u32 16, %s17
      %s265 = smul.u32 16, %s17
      %p266 = scmp.lt.s32.totalorder %s265, 63
      %s267 = scalar_select %p266, %s265, 63
      %s268 = smul.addr %s267, 8
      %s269 = scalar_lea.vmem %s3, %s268
      %s270 = smul.u32 16, %s17
      %s271 = smul.u32 16, %s17
      %p272 = scmp.lt.s32.totalorder %s271, 63
      %s273 = scalar_select %p272, %s271, 63
      %s274 = smul.addr %s273, 8
      %s275 = scalar_lea.vmem %s6, %s274
      %s276 = smul.u32 16, %s17
      %v277 = vld [vmem:[%s263] sm:$0xff]
      %v278 = vld [vmem:[%s263 + $0x8] sm:$0xff]
      %v279 = vld [vmem:[%s263 + $0x10] sm:$0xff]
      %v280 = vld [vmem:[%s263 + $0x18] sm:$0xff]
      %v281 = vld [vmem:[%s263 + $0x20] sm:$0xff]
      %v282 = vld [vmem:[%s263 + $0x28] sm:$0xff]
      %v283 = vld [vmem:[%s263 + $0x30] sm:$0xff]
      %v284 = vld [vmem:[%s263 + $0x38] sm:$0xff]
      %v285 = vld [vmem:[%s263 + $0x40] sm:$0xff]
      %v286 = vld [vmem:[%s263 + $0x48] sm:$0xff]
      %v287 = vld [vmem:[%s263 + $0x50] sm:$0xff]
      %v288 = vld [vmem:[%s263 + $0x58] sm:$0xff]
      %v289 = vld [vmem:[%s263 + $0x60] sm:$0xff]
      %v290 = vld [vmem:[%s263 + $0x68] sm:$0xff]
      %v291 = vld [vmem:[%s263 + $0x70] sm:$0xff]
      %v292 = vld [vmem:[%s263 + $0x78] sm:$0xff]
      %v293 = vld [vmem:[%s1] sm:$0x1]
      %v295 = vlaneseq
      %v296 = vshrl.u32 %v295, 7
      %v297 = vsub.s32 0, %v296
      %v298 = vrot.slane %v293, %v297
      %v300 = vmul.f32 %v277, %v298
      %v301 = vmul.f32 %v278, %v298
      %v302 = vmul.f32 %v279, %v298
      %v303 = vmul.f32 %v280, %v298
      %v304 = vmul.f32 %v281, %v298
      %v305 = vmul.f32 %v282, %v298
      %v306 = vmul.f32 %v283, %v298
      %v307 = vmul.f32 %v284, %v298
      %v308 = vmul.f32 %v285, %v298
      %v309 = vmul.f32 %v286, %v298
      %v310 = vmul.f32 %v287, %v298
      %v311 = vmul.f32 %v288, %v298
      %v312 = vmul.f32 %v289, %v298
      %v313 = vmul.f32 %v290, %v298
      %v314 = vmul.f32 %v291, %v298
      %v315 = vmul.f32 %v292, %v298
      %v316 = vld [vmem:[%s2] sm:$0x1]
      %v318 = vlaneseq
      %v319 = vshrl.u32 %v318, 7
      %v320 = vsub.s32 0, %v319
      %v321 = vrot.slane %v316, %v320
      %v323 = vadd.f32 %v300, %v321
      %v324 = vadd.f32 %v301, %v321
      %v325 = vadd.f32 %v302, %v321
      %v326 = vadd.f32 %v303, %v321
      %v327 = vadd.f32 %v304, %v321
      %v328 = vadd.f32 %v305, %v321
      %v329 = vadd.f32 %v306, %v321
      %v330 = vadd.f32 %v307, %v321
      %v331 = vadd.f32 %v308, %v321
      %v332 = vadd.f32 %v309, %v321
      %v333 = vadd.f32 %v310, %v321
      %v334 = vadd.f32 %v311, %v321
      %v335 = vadd.f32 %v312, %v321
      %v336 = vadd.f32 %v313, %v321
      %v337 = vadd.f32 %v314, %v321
      %v338 = vadd.f32 %v315, %v321
      %v339 = vld [vmem:[%s269] sm:$0xff]
      %v340 = vld [vmem:[%s269 + $0x8] sm:$0xff]
      %v341 = vld [vmem:[%s269 + $0x10] sm:$0xff]
      %v342 = vld [vmem:[%s269 + $0x18] sm:$0xff]
      %v343 = vld [vmem:[%s269 + $0x20] sm:$0xff]
      %v344 = vld [vmem:[%s269 + $0x28] sm:$0xff]
      %v345 = vld [vmem:[%s269 + $0x30] sm:$0xff]
      %v346 = vld [vmem:[%s269 + $0x38] sm:$0xff]
      %v347 = vld [vmem:[%s269 + $0x40] sm:$0xff]
      %v348 = vld [vmem:[%s269 + $0x48] sm:$0xff]
      %v349 = vld [vmem:[%s269 + $0x50] sm:$0xff]
      %v350 = vld [vmem:[%s269 + $0x58] sm:$0xff]
      %v351 = vld [vmem:[%s269 + $0x60] sm:$0xff]
      %v352 = vld [vmem:[%s269 + $0x68] sm:$0xff]
      %v353 = vld [vmem:[%s269 + $0x70] sm:$0xff]
      %v354 = vld [vmem:[%s269 + $0x78] sm:$0xff]
      %v355 = vld [vmem:[%s4] sm:$0x1]
      %v357 = vlaneseq
      %v358 = vshrl.u32 %v357, 7
      %v359 = vsub.s32 0, %v358
      %v360 = vrot.slane %v355, %v359
      %v362 = vmul.f32 %v339, %v360
      %v363 = vmul.f32 %v340, %v360
      %v364 = vmul.f32 %v341, %v360
      %v365 = vmul.f32 %v342, %v360
      %v366 = vmul.f32 %v343, %v360
      %v367 = vmul.f32 %v344, %v360
      %v368 = vmul.f32 %v345, %v360
      %v369 = vmul.f32 %v346, %v360
      %v370 = vmul.f32 %v347, %v360
      %v371 = vmul.f32 %v348, %v360
      %v372 = vmul.f32 %v349, %v360
      %v373 = vmul.f32 %v350, %v360
      %v374 = vmul.f32 %v351, %v360
      %v375 = vmul.f32 %v352, %v360
      %v376 = vmul.f32 %v353, %v360
      %v377 = vmul.f32 %v354, %v360
      %v378 = vadd.f32 %v323, %v362
      %v379 = vadd.f32 %v324, %v363
      %v380 = vadd.f32 %v325, %v364
      %v381 = vadd.f32 %v326, %v365
      %v382 = vadd.f32 %v327, %v366
      %v383 = vadd.f32 %v328, %v367
      %v384 = vadd.f32 %v329, %v368
      %v385 = vadd.f32 %v330, %v369
      %v386 = vadd.f32 %v331, %v370
      %v387 = vadd.f32 %v332, %v371
      %v388 = vadd.f32 %v333, %v372
      %v389 = vadd.f32 %v334, %v373
      %v390 = vadd.f32 %v335, %v374
      %v391 = vadd.f32 %v336, %v375
      %v392 = vadd.f32 %v337, %v376
      %v393 = vadd.f32 %v338, %v377
      %v394 = vld [vmem:[%s5] sm:$0x1]
      %v396 = vlaneseq
      %v397 = vshrl.u32 %v396, 7
      %v398 = vsub.s32 0, %v397
      %v399 = vrot.slane %v394, %v398
      %v401 = vadd.f32 %v378, %v399
      %v402 = vadd.f32 %v379, %v399
      %v403 = vadd.f32 %v380, %v399
      %v404 = vadd.f32 %v381, %v399
      %v405 = vadd.f32 %v382, %v399
      %v406 = vadd.f32 %v383, %v399
      %v407 = vadd.f32 %v384, %v399
      %v408 = vadd.f32 %v385, %v399
      %v409 = vadd.f32 %v386, %v399
      %v410 = vadd.f32 %v387, %v399
      %v411 = vadd.f32 %v388, %v399
      %v412 = vadd.f32 %v389, %v399
      %v413 = vadd.f32 %v390, %v399
      %v414 = vadd.f32 %v391, %v399
      %v415 = vadd.f32 %v392, %v399
      %v416 = vadd.f32 %v393, %v399
      %v417 = vmax.f32 %v401, 0.0
      %v418 = vmax.f32 %v402, 0.0
      %v419 = vmax.f32 %v403, 0.0
      %v420 = vmax.f32 %v404, 0.0
      %v421 = vmax.f32 %v405, 0.0
      %v422 = vmax.f32 %v406, 0.0
      %v423 = vmax.f32 %v407, 0.0
      %v424 = vmax.f32 %v408, 0.0
      %v425 = vmax.f32 %v409, 0.0
      %v426 = vmax.f32 %v410, 0.0
      %v427 = vmax.f32 %v411, 0.0
      %v428 = vmax.f32 %v412, 0.0
      %v429 = vmax.f32 %v413, 0.0
      %v430 = vmax.f32 %v414, 0.0
      %v431 = vmax.f32 %v415, 0.0
      %v432 = vmax.f32 %v416, 0.0
      %433 = vst [vmem:[%s275] sm:$0xff] %v417
      %434 = vst [vmem:[%s275 + $0x8] sm:$0xff] %v418
      %435 = vst [vmem:[%s275 + $0x10] sm:$0xff] %v419
      %436 = vst [vmem:[%s275 + $0x18] sm:$0xff] %v420
      %437 = vst [vmem:[%s275 + $0x20] sm:$0xff] %v421
      %438 = vst [vmem:[%s275 + $0x28] sm:$0xff] %v422
      %439 = vst [vmem:[%s275 + $0x30] sm:$0xff] %v423
      %440 = vst [vmem:[%s275 + $0x38] sm:$0xff] %v424
      %441 = vst [vmem:[%s275 + $0x40] sm:$0xff] %v425
      %442 = vst [vmem:[%s275 + $0x48] sm:$0xff] %v426
      %443 = vst [vmem:[%s275 + $0x50] sm:$0xff] %v427
      %444 = vst [vmem:[%s275 + $0x58] sm:$0xff] %v428
      %445 = vst [vmem:[%s275 + $0x60] sm:$0xff] %v429
      %446 = vst [vmem:[%s275 + $0x68] sm:$0xff] %v430
      %447 = vst [vmem:[%s275 + $0x70] sm:$0xff] %v431
      %448 = vst [vmem:[%s275 + $0x78] sm:$0xff] %v432
      %s449 = smul.u32 16, %s17
      %p450 = scmp.lt.s32.totalorder %s449, 63
      %s451 = scalar_select %p450, %s449, 63
      %s452 = smul.addr %s451, 8
      %s453 = scalar_lea.vmem %s6, %s452
      // Predicated region
      $region45: #{basic_block_forward.7} parent=43 // pred_check
        %p454 = pneg %p171
      $region46: #{basic_block_forward.7} parent=43 // pred_check_branch
        %456 = sbr.rel (%p454) target = $region48
      $region47: #{basic_block_forward.7} parent=43 // pred_region
        %s457 = smul.u32 16, %s17
      $region48: #{basic_block_forward.7} parent=43 // pred_fallthru
        _
    $region44: #{basic_block_forward.7} parent=5 // pred_fallthru
      _
    %p458 = scmp.le.s32.totalorder 2, %s12
    // Predicated region
    $region49: #{basic_block_forward.7} parent=5 // pred_check
      %p459 = pneg %p458
    $region50: #{basic_block_forward.7} parent=5 // pred_check_branch
      %461 = sbr.rel (%p459) target = $region52
    $region51: #{basic_block_forward.7} parent=5 // pred_region
      %s462 = ssub.s32 %s12, 2
      // Predicated region
      $region53: #{basic_block_forward.7} parent=51 // pred_check
        %p463 = pneg %p177
      $region54: #{basic_block_forward.7} parent=51 // pred_check_branch
        %465 = sbr.rel (%p463) target = $region56
      $region55: #{basic_block_forward.7} parent=51 // pred_region
        %s466 = smul.u32 16, %s18
        %p467 = scmp.lt.s32.totalorder %s466, 63
        %s468 = scalar_select %p467, %s466, 63
        %s469 = smul.addr %s468, 8
        %s470 = scalar_lea.vmem %s6, %s469
      $region56: #{basic_block_forward.7} parent=51 // pred_fallthru
        _
    $region52: #{basic_block_forward.7} parent=5 // pred_fallthru
      _
  $region6: #{basic_block_forward.7} parent=0 // loop_footer
    %s16 = sadd.s32 1, %s12
  $region7: #{basic_block_forward.7} parent=0 // loop_footer_branch
    %11 = sbr.rel target = $region3
  $region8: #{basic_block_forward.7} parent=0 // loop_exit
    _

</llo_original>
